<compile_context>
chip_gen: v6e
topology: v6e:2x2x1
jax: 0.10.0
libtpu: 0.0.40
codegen_flags: <defaults>
</compile_context>

<pallas_src>
import functools

import jax
import jax.numpy as jnp
from jax.experimental import pallas as pl
from jax.experimental.pallas import tpu as pltpu

BN_EPS = 1e-5


def _vmem_capacity_bytes():
    try:
        return int(pltpu.get_tpu_info().vmem_capacity_bytes)
    except Exception:
        return 64 * 1024 * 1024  # conservative fallback (v7x per-TC VMEM)


# ---------------------------------------------------------------------------
# Kernel A: global average pool on the NCHW view  (N, C, HW) -> (N, C)
# ---------------------------------------------------------------------------
def gap_kernel_single(x_ref, gfeat_ref, *, inv_hw):
    # Full-HW tile: one lane-reduce (XLU) per (n, c) block, no accumulation loop.
    gfeat_ref[...] = jnp.sum(x_ref[...].astype(jnp.float32), axis=-1) * inv_hw


def gap_kernel_accum(x_ref, gfeat_ref, *, inv_hw):
    # HW split across grid axis 2; accumulate directly into the resident f32 output.
    k = pl.program_id(2)

    @pl.when(k == 0)
    def _():
        gfeat_ref[...] = jnp.zeros_like(gfeat_ref)

    gfeat_ref[...] += jnp.sum(x_ref[...].astype(jnp.float32), axis=-1)

    @pl.when(k == pl.num_programs(2) - 1)
    def _():
        gfeat_ref[...] = gfeat_ref[...] * inv_hw


# ---------------------------------------------------------------------------
# Kernel B1: BatchNorm1d (training batch stats, bias frozen at 0)
# ---------------------------------------------------------------------------
def bn_kernel(gfeat_ref, gamma_ref, feat_ref, *, inv_n):
    gf = gfeat_ref[...]                                         # (N, C) f32
    mean = jnp.sum(gf, axis=0, keepdims=True) * inv_n
    xc = gf - mean
    var = jnp.sum(xc * xc, axis=0, keepdims=True) * inv_n       # biased var (PyTorch norm)
    scale = gamma_ref[...] * jax.lax.rsqrt(var + BN_EPS)        # gamma folded into inv_std
    feat_ref[...] = (xc * scale).astype(feat_ref.dtype)         # bnneck bias == 0 (frozen)
    # TODO(synk): running_mean/running_var momentum update not emitted (state side-effect).


# ---------------------------------------------------------------------------
# Kernel B2: classifier  cls = feat @ W^T, weight streamed over class tiles
# ---------------------------------------------------------------------------
def cls_kernel(feat_ref, w_ref, cls_ref):
    # feat (N, C) and w (tile_nc, C): contract C against C on the MXU, f32 accumulate.
    cls_ref[...] = jax.lax.dot_general(
        feat_ref[...], w_ref[...],
        dimension_numbers=(((1,), (1,)), ((), ())),
        preferred_element_type=jnp.float32)


# ---------------------------------------------------------------------------
# Tiling helpers
# ---------------------------------------------------------------------------
def _choose_gap_tiles(n, c, hw, itemsize, budget):
    """(tile_n, tile_c, tile_hw) for the (N, C, HW) GAP input under a byte budget."""
    tile_n = 8 if (n % 8 == 0) else n
    # tile_c a multiple of 128: lane-dense output, sublane-aligned input for any dtype.
    c_cands = [d for d in range(128, c + 1, 128) if c % d == 0] or [c]
    for tc in sorted(c_cands, reverse=True):
        if tile_n * tc * hw * itemsize <= budget:
            return tile_n, tc, hw            # full-HW tile: reduction axis collapses to 1
    tc = min(c_cands)
    hw_cands = [d for d in range(128, hw, 128) if hw % d == 0]
    for thw in sorted(hw_cands, reverse=True):
        if tile_n * tc * thw * itemsize <= budget:
            return tile_n, tc, thw
    # No lane-aligned tiling fits the budget; use the smallest aligned tile anyway.
    return tile_n, tc, (min(hw_cands) if hw_cands else hw)


# ---------------------------------------------------------------------------
# Wrapper
# ---------------------------------------------------------------------------
def backbone_forward(x, kp_x, params, *, xf_tile_budget_bytes=None, cls_tile_nc=512):
    """Training-path forward of Backbone (cos_layer=False, neck='bnneck').

    x    : (N, C, H, W) backbone feature map (NCHW, PyTorch convention; f32 or bf16)
    kp_x : unused by the reference forward (kept for signature parity)
    returns (cls_score, global_feat)
    """
    del kp_x  # not used in Backbone.forward
    N, C, H, W = x.shape
    HW = H * W
    itemsize = jnp.dtype(x.dtype).itemsize
    vmem_cap = _vmem_capacity_bytes()

    # ---- kernel A: pooled features (no transpose; reshape of contiguous dims is free) --
    xf = x.reshape(N, C, HW)
    if xf_tile_budget_bytes is None:
        # ~12.8 MiB on 128 MiB-VMEM parts (v5e/v6e), ~6.4 MiB on v7x (64 MiB).
        xf_tile_budget_bytes = vmem_cap // 10
    tile_n, tile_c, tile_hw = _choose_gap_tiles(N, C, HW, itemsize, xf_tile_budget_bytes)
    n_hw = HW // tile_hw
    grid_a = (N // tile_n, C // tile_c, n_hw)

    in_tile_bytes = tile_n * tile_c * tile_hw * itemsize
    out_tile_bytes = tile_n * tile_c * 4
    vmem_limit_a = int(min(3 * vmem_cap // 4,
                           max(32 * 1024 * 1024,
                               2 * in_tile_bytes + 2 * out_tile_bytes + (4 << 20))))

    gap_body = gap_kernel_single if n_hw == 1 else gap_kernel_accum
    gfeat = pl.pallas_call(
        functools.partial(gap_body, inv_hw=1.0 / HW),
        out_shape=jax.ShapeDtypeStruct((N, C), jnp.float32),
        grid=grid_a,
        in_specs=[pl.BlockSpec((tile_n, tile_c, tile_hw), lambda n, c, k: (n, c, k))],
        out_specs=pl.BlockSpec((tile_n, tile_c), lambda n, c, k: (n, c)),
        compiler_params=pltpu.CompilerParams(
            dimension_semantics=("parallel", "parallel", "arbitrary"),
            vmem_limit_bytes=vmem_limit_a),
        cost_estimate=pl.CostEstimate(
            flops=N * C * HW,
            transcendentals=0,
            bytes_accessed=N * C * HW * itemsize + N * C * 4),
    )(xf)

    # ---- kernel B1: BN with batch stats (tiny, single invocation) -----------------------
    gamma = params["bn_gamma"].reshape(1, C).astype(jnp.float32)
    w = params["classifier_w"].astype(jnp.bfloat16)      # weight-DMA bound -> halve bytes
    num_classes = params["classifier_w"].shape[0]
    wb = jnp.dtype(w.dtype).itemsize

    vmem = pl.BlockSpec(memory_space=pltpu.MemorySpace.VMEM)
    feat = pl.pallas_call(
        functools.partial(bn_kernel, inv_n=1.0 / N),
        out_shape=jax.ShapeDtypeStruct((N, C), w.dtype),
        in_specs=[vmem, vmem],
        out_specs=vmem,
        cost_estimate=pl.CostEstimate(
            flops=6 * N * C, transcendentals=C,
            bytes_accessed=N * C * 4 + C * 4 + N * C * wb),
    )(gfeat, gamma)

    # ---- kernel B2: classifier, weight streamed over class tiles ------------------------
    nc_128 = ((num_classes + 127) // 128) * 128
    tile_nc = ((min(cls_tile_nc, nc_128) + 127) // 128) * 128
    nc_pad = ((num_classes + tile_nc - 1) // tile_nc) * tile_nc
    if nc_pad != num_classes:
        w = jnp.pad(w, ((0, nc_pad - num_classes), (0, 0)))

    w_tile_bytes = tile_nc * C * wb
    feat_bytes = N * C * wb
    cls_tile_bytes = N * tile_nc * 4
    vmem_limit_b = int(min(3 * vmem_cap // 4,
                           max(32 * 1024 * 1024,
                               2 * w_tile_bytes + feat_bytes + 2 * cls_tile_bytes + (4 << 20))))

    cls_pad = pl.pallas_call(
        cls_kernel,
        out_shape=jax.ShapeDtypeStruct((N, nc_pad), jnp.float32),
        grid=(nc_pad // tile_nc,),
        in_specs=[pl.BlockSpec((N, C), lambda j: (0, 0)),
                  pl.BlockSpec((tile_nc, C), lambda j: (j, 0))],
        out_specs=pl.BlockSpec((N, tile_nc), lambda j: (0, j)),
        compiler_params=pltpu.CompilerParams(
            dimension_semantics=("parallel",),
            vmem_limit_bytes=vmem_limit_b),
        cost_estimate=pl.CostEstimate(
            flops=2 * N * C * nc_pad, transcendentals=0,
            bytes_accessed=feat_bytes + nc_pad * C * wb + N * nc_pad * 4),
    )(feat, w)

    cls_score = cls_pad[:, :num_classes]                 # drop lane/tile padding
    global_feat = gfeat.astype(x.dtype)                  # pre-BN pooled features
    return cls_score, global_feat


def init_params(key, in_planes, num_classes):
    # weights_init_classifier: Linear weight ~ N(0, 0.001), no bias
    # weights_init_kaiming on BatchNorm1d: weight=1, bias=0 (bias frozen)
    wk, = jax.random.split(key, 1)
    return {
        "classifier_w": 0.001 * jax.random.normal(
            wk, (num_classes, in_planes), jnp.float32),
        "bn_gamma": jnp.ones((in_planes,), jnp.float32),
        "bn_beta": jnp.zeros((in_planes,), jnp.float32),   # frozen at 0, unused in kernel
    }


if __name__ == "__main__":
    key = jax.random.PRNGKey(0)
    k_x, k_kp, k_p = jax.random.split(key, 3)

    # small stand-in shapes: real in_planes is 2048; spatial is the ResNet output size.
    N, C, H, W = 8, 256, 16, 16
    NUM_CLASSES = 8

    x = jax.random.normal(k_x, (N, C, H, W), jnp.float32)
    kp_x = jax.random.normal(k_kp, (N, C, H, W), jnp.float32)
    params = init_params(k_p, C, NUM_CLASSES)

    # default budget -> full-HW single-step GAP; tiny budget -> C-tiled + HW accumulation.
    cls_a, gf_a = backbone_forward(x, kp_x, params)
    cls_b, gf_b = backbone_forward(x, kp_x, params, xf_tile_budget_bytes=512 * 1024)
    jax.block_until_ready((cls_a, gf_a, cls_b, gf_b))

    # pure-JAX reference (classifier weight/feat are bf16 in-kernel, mirrored here)
    gf_ref = x.mean(axis=(2, 3))
    mean = gf_ref.sum(axis=0, keepdims=True) * (1.0 / N)
    xc = gf_ref - mean
    var = (xc * xc).sum(axis=0, keepdims=True) * (1.0 / N)
    scale = params["bn_gamma"].reshape(1, C) * jax.lax.rsqrt(var + BN_EPS)
    feat_ref = (xc * scale + params["bn_beta"].reshape(1, C))
    feat_ref = feat_ref.astype(jnp.bfloat16).astype(jnp.float32)
    w_ref = params["classifier_w"].astype(jnp.bfloat16).astype(jnp.float32)
    cls_ref = feat_ref @ w_ref.T

    for cls_score, global_feat in ((cls_a, gf_a), (cls_b, gf_b)):
        assert cls_score.shape == (N, NUM_CLASSES)
        assert global_feat.shape == (N, C)
        assert jnp.allclose(global_feat, gf_ref, atol=1e-5, rtol=1e-5)
        assert jnp.allclose(cls_score, cls_ref, atol=1e-4, rtol=1e-3)
    print("KERNEL_OK")
</pallas_src>

<mosaic_0001>
module attributes {stable_mosaic.version = 11 : i64} {
  func.func @gap_kernel_single(%arg0: i32, %arg1: i32, %arg2: i32, %arg3: memref<8x256x256xf32, #tpu.memory_space<vmem>>, %arg4: memref<8x256xf32, #tpu.memory_space<vmem>>) attributes {dimension_semantics = [#tpu.dimension_semantics<parallel>, #tpu.dimension_semantics<parallel>, #tpu.dimension_semantics<arbitrary>], iteration_bounds = array<i64: 1, 1, 1>, scalar_prefetch = 0 : i64, scratch_operands = 0 : i64, tpu.core_type = #tpu.core_type<tc>, window_params = [{transform_indices = @transform_0, window_bounds = array<i64: 8, 256, 256>}, {transform_indices = @transform_1, window_bounds = array<i64: 8, 256>}]} {
    %c0 = arith.constant 0 : index
    %c0_0 = arith.constant 0 : index
    %c0_1 = arith.constant 0 : index
    %0 = vector.load %arg3[%c0, %c0_0, %c0_1] : memref<8x256x256xf32, #tpu.memory_space<vmem>>, vector<8x256x256xf32>
    %cst = arith.constant dense<0.000000e+00> : vector<8x256xf32>
    %1 = vector.multi_reduction <add>, %0, %cst [2] : vector<8x256x256xf32> to vector<8x256xf32>
    %cst_2 = arith.constant 3.906250e-03 : f32
    %2 = vector.broadcast %cst_2 : f32 to vector<8x256xf32>
    %3 = arith.mulf %1, %2 : vector<8x256xf32>
    %c0_3 = arith.constant 0 : index
    %c0_4 = arith.constant 0 : index
    %4 = vector.load %arg4[%c0_3, %c0_4] : memref<8x256xf32, #tpu.memory_space<vmem>>, vector<8x256xf32>
    tpu.vector_store %arg4[%c0_3, %c0_4], %3 {strides = array<i32>} : memref<8x256xf32, #tpu.memory_space<vmem>>, vector<8x256xf32>,
    return
  }
  func.func @transform_0(%arg0: i32, %arg1: i32, %arg2: i32) -> (i32, i32, i32) {
    %c0_i32 = arith.constant 0 : i32
    return %arg0, %arg1, %arg2 : i32, i32, i32
  }
  func.func @transform_1(%arg0: i32, %arg1: i32, %arg2: i32) -> (i32, i32) {
    %c0_i32 = arith.constant 0 : i32
    return %arg0, %arg1 : i32, i32
  }
}

</mosaic_0001>

<llo_original>
// kernel: tpu_custom_call.1
$region0: #{tpu_custom_call.1}
  #allocation0 [shape = 'u32[]', space=smem, size = 0x4, offset = 0x4, fixed_abs, tag = 'smem constant byte address 0x4 - core index']
  #allocation1 [shape = 'u32[144,128]{1,0:T(1,128)}', space=vmem, size = 0x12000, scoped, tag = 'internal scratch']
  %s0 = inlined_call_operand.hbm [shape: f32[8,256,256], index: 0, kind: input, shape index: {}]
  %s1 = inlined_call_operand.hbm [shape: f32[8,256], index: 1, kind: output, shape index: {}]
  %s2 = sld [smem:[#allocation0]]
  $region18: #{tpu_custom_call.1} parent=0
    _
  %s4 = ssub.s32 1, %s2
  %s5 = scalar_select 0, %s4, %s2
  $region1: #{tpu_custom_call.1} parent=0
    #allocation2 [shape = 'u8[2097152]{0}', space=vmem, size = 0x200000, scoped, tag = 'input window, operand 0, single buffered']
    #allocation3 [shape = 's32[1]{0}', space=sflag, size = 0x4, scoped, tag = 'scoped memory for tpu_custom_call.1']
    #allocation4 [shape = 's32[1]{0}', space=sflag, size = 0x4, scoped, tag = 'scoped memory for tpu_custom_call.1']
    #allocation5 [shape = 'u8[8192]{0}', space=vmem, size = 0x2000, scoped, tag = 'output window, operand 0, single buffered']
    %6 = vsyncpa [#allocation3], 0
    %7 = vsyncpa [#allocation4], 0
    // Predicated region
    $region2: #{tpu_custom_call.1} parent=1 // pred_check
      _
    $region3: #{tpu_custom_call.1} parent=1 // pred_check_branch
      %9 = sbr.rel (0) target = $region5
    $region4: #{tpu_custom_call.1} parent=1 // pred_region
      %s11 = ssub.s32 65536, 65536
      %12 = vsyncadd [#allocation3], %s11
      %s13 = sshll.u32 [#allocation2], 4
      %s14 = int_to_ptr.vmem [resolvable:$true] %s13
      %19 = dma.hbm_to_vmem [thread:$0]  %s0, 65536, %s14, [#allocation3], 256, 256, 16
    $region5: #{tpu_custom_call.1} parent=1 // pred_fallthru
      _
    // Predicated region
    $region6: #{tpu_custom_call.1} parent=1 // pred_check
      _
    $region7: #{tpu_custom_call.1} parent=1 // pred_check_branch
      %21 = sbr.rel (0) target = $region9
    $region8: #{tpu_custom_call.1} parent=1 // pred_region
      %22 = dma.done [#allocation3], 65536
    $region9: #{tpu_custom_call.1} parent=1 // pred_fallthru
      _
    %v23 = vld [vmem:[#allocation2] sm:$0xff]
    %v24 = vld [vmem:[#allocation2 + $0x8] sm:$0xff]
    %v25 = vld [vmem:[#allocation2 + $0x10] sm:$0xff]
    %v26 = vld [vmem:[#allocation2 + $0x18] sm:$0xff]
    %v27 = vld [vmem:[#allocation2 + $0x20] sm:$0xff]
    %v28 = vld [vmem:[#allocation2 + $0x28] sm:$0xff]
    %v29 = vld [vmem:[#allocation2 + $0x30] sm:$0xff]
    %v30 = vld [vmem:[#allocation2 + $0x38] sm:$0xff]
    %v31 = vld [vmem:[#allocation2 + $0x40] sm:$0xff]
    %v32 = vld [vmem:[#allocation2 + $0x48] sm:$0xff]
    %v33 = vld [vmem:[#allocation2 + $0x50] sm:$0xff]
    %v34 = vld [vmem:[#allocation2 + $0x58] sm:$0xff]
    %v35 = vld [vmem:[#allocation2 + $0x60] sm:$0xff]
    %v36 = vld [vmem:[#allocation2 + $0x68] sm:$0xff]
    %v37 = vld [vmem:[#allocation2 + $0x70] sm:$0xff]
    %v38 = vld [vmem:[#allocation2 + $0x78] sm:$0xff]
    %v39 = vld [vmem:[#allocation2 + $0x80] sm:$0xff]
    %v40 = vld [vmem:[#allocation2 + $0x88] sm:$0xff]
    %v41 = vld [vmem:[#allocation2 + $0x90] sm:$0xff]
    %v42 = vld [vmem:[#allocation2 + $0x98] sm:$0xff]
    %v43 = vld [vmem:[#allocation2 + $0xa0] sm:$0xff]
    %v44 = vld [vmem:[#allocation2 + $0xa8] sm:$0xff]
    %v45 = vld [vmem:[#allocation2 + $0xb0] sm:$0xff]
    %v46 = vld [vmem:[#allocation2 + $0xb8] sm:$0xff]
    %v47 = vld [vmem:[#allocation2 + $0xc0] sm:$0xff]
    %v48 = vld [vmem:[#allocation2 + $0xc8] sm:$0xff]
    %v49 = vld [vmem:[#allocation2 + $0xd0] sm:$0xff]
    %v50 = vld [vmem:[#allocation2 + $0xd8] sm:$0xff]
    %v51 = vld [vmem:[#allocation2 + $0xe0] sm:$0xff]
    %v52 = vld [vmem:[#allocation2 + $0xe8] sm:$0xff]
    %v53 = vld [vmem:[#allocation2 + $0xf0] sm:$0xff]
    %v54 = vld [vmem:[#allocation2 + $0xf8] sm:$0xff]
    %v55 = vld [vmem:[#allocation2 + $0x100] sm:$0xff]
    %v56 = vld [vmem:[#allocation2 + $0x108] sm:$0xff]
    %v57 = vld [vmem:[#allocation2 + $0x110] sm:$0xff]
    %v58 = vld [vmem:[#allocation2 + $0x118] sm:$0xff]
    %v59 = vld [vmem:[#allocation2 + $0x120] sm:$0xff]
    %v60 = vld [vmem:[#allocation2 + $0x128] sm:$0xff]
    %v61 = vld [vmem:[#allocation2 + $0x130] sm:$0xff]
    %v62 = vld [vmem:[#allocation2 + $0x138] sm:$0xff]
    %v63 = vld [vmem:[#allocation2 + $0x140] sm:$0xff]
    %v64 = vld [vmem:[#allocation2 + $0x148] sm:$0xff]
    %v65 = vld [vmem:[#allocation2 + $0x150] sm:$0xff]
    %v66 = vld [vmem:[#allocation2 + $0x158] sm:$0xff]
    %v67 = vld [vmem:[#allocation2 + $0x160] sm:$0xff]
    %v68 = vld [vmem:[#allocation2 + $0x168] sm:$0xff]
    %v69 = vld [vmem:[#allocation2 + $0x170] sm:$0xff]
    %v70 = vld [vmem:[#allocation2 + $0x178] sm:$0xff]
    %v71 = vld [vmem:[#allocation2 + $0x180] sm:$0xff]
    %v72 = vld [vmem:[#allocation2 + $0x188] sm:$0xff]
    %v73 = vld [vmem:[#allocation2 + $0x190] sm:$0xff]
    %v74 = vld [vmem:[#allocation2 + $0x198] sm:$0xff]
    %v75 = vld [vmem:[#allocation2 + $0x1a0] sm:$0xff]
    %v76 = vld [vmem:[#allocation2 + $0x1a8] sm:$0xff]
    %v77 = vld [vmem:[#allocation2 + $0x1b0] sm:$0xff]
    %v78 = vld [vmem:[#allocation2 + $0x1b8] sm:$0xff]
    %v79 = vld [vmem:[#allocation2 + $0x1c0] sm:$0xff]
    %v80 = vld [vmem:[#allocation2 + $0x1c8] sm:$0xff]
    %v81 = vld [vmem:[#allocation2 + $0x1d0] sm:$0xff]
    %v82 = vld [vmem:[#allocation2 + $0x1d8] sm:$0xff]
    %v83 = vld [vmem:[#allocation2 + $0x1e0] sm:$0xff]
    %v84 = vld [vmem:[#allocation2 + $0x1e8] sm:$0xff]
    %v85 = vld [vmem:[#allocation2 + $0x1f0] sm:$0xff]
    %v86 = vld [vmem:[#allocation2 + $0x1f8] sm:$0xff]
    %v87 = vld [vmem:[#allocation2 + $0x200] sm:$0xff]
    %v88 = vld [vmem:[#allocation2 + $0x208] sm:$0xff]
    %v89 = vld [vmem:[#allocation2 + $0x210] sm:$0xff]
    %v90 = vld [vmem:[#allocation2 + $0x218] sm:$0xff]
    %v91 = vld [vmem:[#allocation2 + $0x220] sm:$0xff]
    %v92 = vld [vmem:[#allocation2 + $0x228] sm:$0xff]
    %v93 = vld [vmem:[#allocation2 + $0x230] sm:$0xff]
    %v94 = vld [vmem:[#allocation2 + $0x238] sm:$0xff]
    %v95 = vld [vmem:[#allocation2 + $0x240] sm:$0xff]
    %v96 = vld [vmem:[#allocation2 + $0x248] sm:$0xff]
    %v97 = vld [vmem:[#allocation2 + $0x250] sm:$0xff]
    %v98 = vld [vmem:[#allocation2 + $0x258] sm:$0xff]
    %v99 = vld [vmem:[#allocation2 + $0x260] sm:$0xff]
    %v100 = vld [vmem:[#allocation2 + $0x268] sm:$0xff]
    %v101 = vld [vmem:[#allocation2 + $0x270] sm:$0xff]
    %v102 = vld [vmem:[#allocation2 + $0x278] sm:$0xff]
    %v103 = vld [vmem:[#allocation2 + $0x280] sm:$0xff]
    %v104 = vld [vmem:[#allocation2 + $0x288] sm:$0xff]
    %v105 = vld [vmem:[#allocation2 + $0x290] sm:$0xff]
    %v106 = vld [vmem:[#allocation2 + $0x298] sm:$0xff]
    %v107 = vld [vmem:[#allocation2 + $0x2a0] sm:$0xff]
    %v108 = vld [vmem:[#allocation2 + $0x2a8] sm:$0xff]
    %v109 = vld [vmem:[#allocation2 + $0x2b0] sm:$0xff]
    %v110 = vld [vmem:[#allocation2 + $0x2b8] sm:$0xff]
    %v111 = vld [vmem:[#allocation2 + $0x2c0] sm:$0xff]
    %v112 = vld [vmem:[#allocation2 + $0x2c8] sm:$0xff]
    %v113 = vld [vmem:[#allocation2 + $0x2d0] sm:$0xff]
    %v114 = vld [vmem:[#allocation2 + $0x2d8] sm:$0xff]
    %v115 = vld [vmem:[#allocation2 + $0x2e0] sm:$0xff]
    %v116 = vld [vmem:[#allocation2 + $0x2e8] sm:$0xff]
    %v117 = vld [vmem:[#allocation2 + $0x2f0] sm:$0xff]
    %v118 = vld [vmem:[#allocation2 + $0x2f8] sm:$0xff]
    %v119 = vld [vmem:[#allocation2 + $0x300] sm:$0xff]
    %v120 = vld [vmem:[#allocation2 + $0x308] sm:$0xff]
    %v121 = vld [vmem:[#allocation2 + $0x310] sm:$0xff]
    %v122 = vld [vmem:[#allocation2 + $0x318] sm:$0xff]
    %v123 = vld [vmem:[#allocation2 + $0x320] sm:$0xff]
    %v124 = vld [vmem:[#allocation2 + $0x328] sm:$0xff]
    %v125 = vld [vmem:[#allocation2 + $0x330] sm:$0xff]
    %v126 = vld [vmem:[#allocation2 + $0x338] sm:$0xff]
    %v127 = vld [vmem:[#allocation2 + $0x340] sm:$0xff]
    %v128 = vld [vmem:[#allocation2 + $0x348] sm:$0xff]
    %v129 = vld [vmem:[#allocation2 + $0x350] sm:$0xff]
    %v130 = vld [vmem:[#allocation2 + $0x358] sm:$0xff]
    %v131 = vld [vmem:[#allocation2 + $0x360] sm:$0xff]
    %v132 = vld [vmem:[#allocation2 + $0x368] sm:$0xff]
    %v133 = vld [vmem:[#allocation2 + $0x370] sm:$0xff]
    %v134 = vld [vmem:[#allocation2 + $0x378] sm:$0xff]
    %v135 = vld [vmem:[#allocation2 + $0x380] sm:$0xff]
    %v136 = vld [vmem:[#allocation2 + $0x388] sm:$0xff]
    %v137 = vld [vmem:[#allocation2 + $0x390] sm:$0xff]
    %v138 = vld [vmem:[#allocation2 + $0x398] sm:$0xff]
    %v139 = vld [vmem:[#allocation2 + $0x3a0] sm:$0xff]
    %v140 = vld [vmem:[#allocation2 + $0x3a8] sm:$0xff]
    %v141 = vld [vmem:[#allocation2 + $0x3b0] sm:$0xff]
    %v142 = vld [vmem:[#allocation2 + $0x3b8] sm:$0xff]
    %v143 = vld [vmem:[#allocation2 + $0x3c0] sm:$0xff]
    %v144 = vld [vmem:[#allocation2 + $0x3c8] sm:$0xff]
    %v145 = vld [vmem:[#allocation2 + $0x3d0] sm:$0xff]
    %v146 = vld [vmem:[#allocation2 + $0x3d8] sm:$0xff]
    %v147 = vld [vmem:[#allocation2 + $0x3e0] sm:$0xff]
    %v148 = vld [vmem:[#allocation2 + $0x3e8] sm:$0xff]
    %v149 = vld [vmem:[#allocation2 + $0x3f0] sm:$0xff]
    %v150 = vld [vmem:[#allocation2 + $0x3f8] sm:$0xff]
    %v151 = vld [vmem:[#allocation2 + $0x400] sm:$0xff]
    %v152 = vld [vmem:[#allocation2 + $0x408] sm:$0xff]
    %v153 = vld [vmem:[#allocation2 + $0x410] sm:$0xff]
    %v154 = vld [vmem:[#allocation2 + $0x418] sm:$0xff]
    %v155 = vld [vmem:[#allocation2 + $0x420] sm:$0xff]
    %v156 = vld [vmem:[#allocation2 + $0x428] sm:$0xff]
    %v157 = vld [vmem:[#allocation2 + $0x430] sm:$0xff]
    %v158 = vld [vmem:[#allocation2 + $0x438] sm:$0xff]
    %v159 = vld [vmem:[#allocation2 + $0x440] sm:$0xff]
    %v160 = vld [vmem:[#allocation2 + $0x448] sm:$0xff]
    %v161 = vld [vmem:[#allocation2 + $0x450] sm:$0xff]
    %v162 = vld [vmem:[#allocation2 + $0x458] sm:$0xff]
    %v163 = vld [vmem:[#allocation2 + $0x460] sm:$0xff]
    %v164 = vld [vmem:[#allocation2 + $0x468] sm:$0xff]
    %v165 = vld [vmem:[#allocation2 + $0x470] sm:$0xff]
    %v166 = vld [vmem:[#allocation2 + $0x478] sm:$0xff]
    %v167 = vld [vmem:[#allocation2 + $0x480] sm:$0xff]
    %v168 = vld [vmem:[#allocation2 + $0x488] sm:$0xff]
    %v169 = vld [vmem:[#allocation2 + $0x490] sm:$0xff]
    %v170 = vld [vmem:[#allocation2 + $0x498] sm:$0xff]
    %v171 = vld [vmem:[#allocation2 + $0x4a0] sm:$0xff]
    %v172 = vld [vmem:[#allocation2 + $0x4a8] sm:$0xff]
    %v173 = vld [vmem:[#allocation2 + $0x4b0] sm:$0xff]
    %v174 = vld [vmem:[#allocation2 + $0x4b8] sm:$0xff]
    %v175 = vld [vmem:[#allocation2 + $0x4c0] sm:$0xff]
    %v176 = vld [vmem:[#allocation2 + $0x4c8] sm:$0xff]
    %v177 = vld [vmem:[#allocation2 + $0x4d0] sm:$0xff]
    %v178 = vld [vmem:[#allocation2 + $0x4d8] sm:$0xff]
    %v179 = vld [vmem:[#allocation2 + $0x4e0] sm:$0xff]
    %v180 = vld [vmem:[#allocation2 + $0x4e8] sm:$0xff]
    %v181 = vld [vmem:[#allocation2 + $0x4f0] sm:$0xff]
    %v182 = vld [vmem:[#allocation2 + $0x4f8] sm:$0xff]
    %v183 = vld [vmem:[#allocation2 + $0x500] sm:$0xff]
    %v184 = vld [vmem:[#allocation2 + $0x508] sm:$0xff]
    %v185 = vld [vmem:[#allocation2 + $0x510] sm:$0xff]
    %v186 = vld [vmem:[#allocation2 + $0x518] sm:$0xff]
    %v187 = vld [vmem:[#allocation2 + $0x520] sm:$0xff]
    %v188 = vld [vmem:[#allocation2 + $0x528] sm:$0xff]
    %v189 = vld [vmem:[#allocation2 + $0x530] sm:$0xff]
    %v190 = vld [vmem:[#allocation2 + $0x538] sm:$0xff]
    %v191 = vld [vmem:[#allocation2 + $0x540] sm:$0xff]
    %v192 = vld [vmem:[#allocation2 + $0x548] sm:$0xff]
    %v193 = vld [vmem:[#allocation2 + $0x550] sm:$0xff]
    %v194 = vld [vmem:[#allocation2 + $0x558] sm:$0xff]
    %v195 = vld [vmem:[#allocation2 + $0x560] sm:$0xff]
    %v196 = vld [vmem:[#allocation2 + $0x568] sm:$0xff]
    %v197 = vld [vmem:[#allocation2 + $0x570] sm:$0xff]
    %v198 = vld [vmem:[#allocation2 + $0x578] sm:$0xff]
    %v199 = vld [vmem:[#allocation2 + $0x580] sm:$0xff]
    %v200 = vld [vmem:[#allocation2 + $0x588] sm:$0xff]
    %v201 = vld [vmem:[#allocation2 + $0x590] sm:$0xff]
    %v202 = vld [vmem:[#allocation2 + $0x598] sm:$0xff]
    %v203 = vld [vmem:[#allocation2 + $0x5a0] sm:$0xff]
    %v204 = vld [vmem:[#allocation2 + $0x5a8] sm:$0xff]
    %v205 = vld [vmem:[#allocation2 + $0x5b0] sm:$0xff]
    %v206 = vld [vmem:[#allocation2 + $0x5b8] sm:$0xff]
    %v207 = vld [vmem:[#allocation2 + $0x5c0] sm:$0xff]
    %v208 = vld [vmem:[#allocation2 + $0x5c8] sm:$0xff]
    %v209 = vld [vmem:[#allocation2 + $0x5d0] sm:$0xff]
    %v210 = vld [vmem:[#allocation2 + $0x5d8] sm:$0xff]
    %v211 = vld [vmem:[#allocation2 + $0x5e0] sm:$0xff]
    %v212 = vld [vmem:[#allocation2 + $0x5e8] sm:$0xff]
    %v213 = vld [vmem:[#allocation2 + $0x5f0] sm:$0xff]
    %v214 = vld [vmem:[#allocation2 + $0x5f8] sm:$0xff]
    %v215 = vld [vmem:[#allocation2 + $0x600] sm:$0xff]
    %v216 = vld [vmem:[#allocation2 + $0x608] sm:$0xff]
    %v217 = vld [vmem:[#allocation2 + $0x610] sm:$0xff]
    %v218 = vld [vmem:[#allocation2 + $0x618] sm:$0xff]
    %v219 = vld [vmem:[#allocation2 + $0x620] sm:$0xff]
    %v220 = vld [vmem:[#allocation2 + $0x628] sm:$0xff]
    %v221 = vld [vmem:[#allocation2 + $0x630] sm:$0xff]
    %v222 = vld [vmem:[#allocation2 + $0x638] sm:$0xff]
    %v223 = vld [vmem:[#allocation2 + $0x640] sm:$0xff]
    %v224 = vld [vmem:[#allocation2 + $0x648] sm:$0xff]
    %v225 = vld [vmem:[#allocation2 + $0x650] sm:$0xff]
    %v226 = vld [vmem:[#allocation2 + $0x658] sm:$0xff]
    %v227 = vld [vmem:[#allocation2 + $0x660] sm:$0xff]
    %v228 = vld [vmem:[#allocation2 + $0x668] sm:$0xff]
    %v229 = vld [vmem:[#allocation2 + $0x670] sm:$0xff]
    %v230 = vld [vmem:[#allocation2 + $0x678] sm:$0xff]
    %v231 = vld [vmem:[#allocation2 + $0x680] sm:$0xff]
    %v232 = vld [vmem:[#allocation2 + $0x688] sm:$0xff]
    %v233 = vld [vmem:[#allocation2 + $0x690] sm:$0xff]
    %v234 = vld [vmem:[#allocation2 + $0x698] sm:$0xff]
    %v235 = vld [vmem:[#allocation2 + $0x6a0] sm:$0xff]
    %v236 = vld [vmem:[#allocation2 + $0x6a8] sm:$0xff]
    %v237 = vld [vmem:[#allocation2 + $0x6b0] sm:$0xff]
    %v238 = vld [vmem:[#allocation2 + $0x6b8] sm:$0xff]
    %v239 = vld [vmem:[#allocation2 + $0x6c0] sm:$0xff]
    %v240 = vld [vmem:[#allocation2 + $0x6c8] sm:$0xff]
    %v241 = vld [vmem:[#allocation2 + $0x6d0] sm:$0xff]
    %v242 = vld [vmem:[#allocation2 + $0x6d8] sm:$0xff]
    %v243 = vld [vmem:[#allocation2 + $0x6e0] sm:$0xff]
    %v244 = vld [vmem:[#allocation2 + $0x6e8] sm:$0xff]
    %v245 = vld [vmem:[#allocation2 + $0x6f0] sm:$0xff]
    %v246 = vld [vmem:[#allocation2 + $0x6f8] sm:$0xff]
    %v247 = vld [vmem:[#allocation2 + $0x700] sm:$0xff]
    %v248 = vld [vmem:[#allocation2 + $0x708] sm:$0xff]
    %v249 = vld [vmem:[#allocation2 + $0x710] sm:$0xff]
    %v250 = vld [vmem:[#allocation2 + $0x718] sm:$0xff]
    %v251 = vld [vmem:[#allocation2 + $0x720] sm:$0xff]
    %v252 = vld [vmem:[#allocation2 + $0x728] sm:$0xff]
    %v253 = vld [vmem:[#allocation2 + $0x730] sm:$0xff]
    %v254 = vld [vmem:[#allocation2 + $0x738] sm:$0xff]
    %v255 = vld [vmem:[#allocation2 + $0x740] sm:$0xff]
    %v256 = vld [vmem:[#allocation2 + $0x748] sm:$0xff]
    %v257 = vld [vmem:[#allocation2 + $0x750] sm:$0xff]
    %v258 = vld [vmem:[#allocation2 + $0x758] sm:$0xff]
    %v259 = vld [vmem:[#allocation2 + $0x760] sm:$0xff]
    %v260 = vld [vmem:[#allocation2 + $0x768] sm:$0xff]
    %v261 = vld [vmem:[#allocation2 + $0x770] sm:$0xff]
    %v262 = vld [vmem:[#allocation2 + $0x778] sm:$0xff]
    %v263 = vld [vmem:[#allocation2 + $0x780] sm:$0xff]
    %v264 = vld [vmem:[#allocation2 + $0x788] sm:$0xff]
    %v265 = vld [vmem:[#allocation2 + $0x790] sm:$0xff]
    %v266 = vld [vmem:[#allocation2 + $0x798] sm:$0xff]
    %v267 = vld [vmem:[#allocation2 + $0x7a0] sm:$0xff]
    %v268 = vld [vmem:[#allocation2 + $0x7a8] sm:$0xff]
    %v269 = vld [vmem:[#allocation2 + $0x7b0] sm:$0xff]
    %v270 = vld [vmem:[#allocation2 + $0x7b8] sm:$0xff]
    %v271 = vld [vmem:[#allocation2 + $0x7c0] sm:$0xff]
    %v272 = vld [vmem:[#allocation2 + $0x7c8] sm:$0xff]
    %v273 = vld [vmem:[#allocation2 + $0x7d0] sm:$0xff]
    %v274 = vld [vmem:[#allocation2 + $0x7d8] sm:$0xff]
    %v275 = vld [vmem:[#allocation2 + $0x7e0] sm:$0xff]
    %v276 = vld [vmem:[#allocation2 + $0x7e8] sm:$0xff]
    %v277 = vld [vmem:[#allocation2 + $0x7f0] sm:$0xff]
    %v278 = vld [vmem:[#allocation2 + $0x7f8] sm:$0xff]
    %v279 = vld [vmem:[#allocation2 + $0x800] sm:$0xff]
    %v280 = vld [vmem:[#allocation2 + $0x808] sm:$0xff]
    %v281 = vld [vmem:[#allocation2 + $0x810] sm:$0xff]
    %v282 = vld [vmem:[#allocation2 + $0x818] sm:$0xff]
    %v283 = vld [vmem:[#allocation2 + $0x820] sm:$0xff]
    %v284 = vld [vmem:[#allocation2 + $0x828] sm:$0xff]
    %v285 = vld [vmem:[#allocation2 + $0x830] sm:$0xff]
    %v286 = vld [vmem:[#allocation2 + $0x838] sm:$0xff]
    %v287 = vld [vmem:[#allocation2 + $0x840] sm:$0xff]
    %v288 = vld [vmem:[#allocation2 + $0x848] sm:$0xff]
    %v289 = vld [vmem:[#allocation2 + $0x850] sm:$0xff]
    %v290 = vld [vmem:[#allocation2 + $0x858] sm:$0xff]
    %v291 = vld [vmem:[#allocation2 + $0x860] sm:$0xff]
    %v292 = vld [vmem:[#allocation2 + $0x868] sm:$0xff]
    %v293 = vld [vmem:[#allocation2 + $0x870] sm:$0xff]
    %v294 = vld [vmem:[#allocation2 + $0x878] sm:$0xff]
    %v295 = vld [vmem:[#allocation2 + $0x880] sm:$0xff]
    %v296 = vld [vmem:[#allocation2 + $0x888] sm:$0xff]
    %v297 = vld [vmem:[#allocation2 + $0x890] sm:$0xff]
    %v298 = vld [vmem:[#allocation2 + $0x898] sm:$0xff]
    %v299 = vld [vmem:[#allocation2 + $0x8a0] sm:$0xff]
    %v300 = vld [vmem:[#allocation2 + $0x8a8] sm:$0xff]
    %v301 = vld [vmem:[#allocation2 + $0x8b0] sm:$0xff]
    %v302 = vld [vmem:[#allocation2 + $0x8b8] sm:$0xff]
    %v303 = vld [vmem:[#allocation2 + $0x8c0] sm:$0xff]
    %v304 = vld [vmem:[#allocation2 + $0x8c8] sm:$0xff]
    %v305 = vld [vmem:[#allocation2 + $0x8d0] sm:$0xff]
    %v306 = vld [vmem:[#allocation2 + $0x8d8] sm:$0xff]
    %v307 = vld [vmem:[#allocation2 + $0x8e0] sm:$0xff]
    %v308 = vld [vmem:[#allocation2 + $0x8e8] sm:$0xff]
    %v309 = vld [vmem:[#allocation2 + $0x8f0] sm:$0xff]
    %v310 = vld [vmem:[#allocation2 + $0x8f8] sm:$0xff]
    %v311 = vld [vmem:[#allocation2 + $0x900] sm:$0xff]
    %v312 = vld [vmem:[#allocation2 + $0x908] sm:$0xff]
    %v313 = vld [vmem:[#allocation2 + $0x910] sm:$0xff]
    %v314 = vld [vmem:[#allocation2 + $0x918] sm:$0xff]
    %v315 = vld [vmem:[#allocation2 + $0x920] sm:$0xff]
    %v316 = vld [vmem:[#allocation2 + $0x928] sm:$0xff]
    %v317 = vld [vmem:[#allocation2 + $0x930] sm:$0xff]
    %v318 = vld [vmem:[#allocation2 + $0x938] sm:$0xff]
    %v319 = vld [vmem:[#allocation2 + $0x940] sm:$0xff]
    %v320 = vld [vmem:[#allocation2 + $0x948] sm:$0xff]
    %v321 = vld [vmem:[#allocation2 + $0x950] sm:$0xff]
    %v322 = vld [vmem:[#allocation2 + $0x958] sm:$0xff]
    %v323 = vld [vmem:[#allocation2 + $0x960] sm:$0xff]
    %v324 = vld [vmem:[#allocation2 + $0x968] sm:$0xff]
    %v325 = vld [vmem:[#allocation2 + $0x970] sm:$0xff]
    %v326 = vld [vmem:[#allocation2 + $0x978] sm:$0xff]
    %v327 = vld [vmem:[#allocation2 + $0x980] sm:$0xff]
    %v328 = vld [vmem:[#allocation2 + $0x988] sm:$0xff]
    %v329 = vld [vmem:[#allocation2 + $0x990] sm:$0xff]
    %v330 = vld [vmem:[#allocation2 + $0x998] sm:$0xff]
    %v331 = vld [vmem:[#allocation2 + $0x9a0] sm:$0xff]
    %v332 = vld [vmem:[#allocation2 + $0x9a8] sm:$0xff]
    %v333 = vld [vmem:[#allocation2 + $0x9b0] sm:$0xff]
    %v334 = vld [vmem:[#allocation2 + $0x9b8] sm:$0xff]
    %v335 = vld [vmem:[#allocation2 + $0x9c0] sm:$0xff]
    %v336 = vld [vmem:[#allocation2 + $0x9c8] sm:$0xff]
    %v337 = vld [vmem:[#allocation2 + $0x9d0] sm:$0xff]
    %v338 = vld [vmem:[#allocation2 + $0x9d8] sm:$0xff]
    %v339 = vld [vmem:[#allocation2 + $0x9e0] sm:$0xff]
    %v340 = vld [vmem:[#allocation2 + $0x9e8] sm:$0xff]
    %v341 = vld [vmem:[#allocation2 + $0x9f0] sm:$0xff]
    %v342 = vld [vmem:[#allocation2 + $0x9f8] sm:$0xff]
    %v343 = vld [vmem:[#allocation2 + $0xa00] sm:$0xff]
    %v344 = vld [vmem:[#allocation2 + $0xa08] sm:$0xff]
    %v345 = vld [vmem:[#allocation2 + $0xa10] sm:$0xff]
    %v346 = vld [vmem:[#allocation2 + $0xa18] sm:$0xff]
    %v347 = vld [vmem:[#allocation2 + $0xa20] sm:$0xff]
    %v348 = vld [vmem:[#allocation2 + $0xa28] sm:$0xff]
    %v349 = vld [vmem:[#allocation2 + $0xa30] sm:$0xff]
    %v350 = vld [vmem:[#allocation2 + $0xa38] sm:$0xff]
    %v351 = vld [vmem:[#allocation2 + $0xa40] sm:$0xff]
    %v352 = vld [vmem:[#allocation2 + $0xa48] sm:$0xff]
    %v353 = vld [vmem:[#allocation2 + $0xa50] sm:$0xff]
    %v354 = vld [vmem:[#allocation2 + $0xa58] sm:$0xff]
    %v355 = vld [vmem:[#allocation2 + $0xa60] sm:$0xff]
    %v356 = vld [vmem:[#allocation2 + $0xa68] sm:$0xff]
    %v357 = vld [vmem:[#allocation2 + $0xa70] sm:$0xff]
    %v358 = vld [vmem:[#allocation2 + $0xa78] sm:$0xff]
    %v359 = vld [vmem:[#allocation2 + $0xa80] sm:$0xff]
    %v360 = vld [vmem:[#allocation2 + $0xa88] sm:$0xff]
    %v361 = vld [vmem:[#allocation2 + $0xa90] sm:$0xff]
    %v362 = vld [vmem:[#allocation2 + $0xa98] sm:$0xff]
    %v363 = vld [vmem:[#allocation2 + $0xaa0] sm:$0xff]
    %v364 = vld [vmem:[#allocation2 + $0xaa8] sm:$0xff]
    %v365 = vld [vmem:[#allocation2 + $0xab0] sm:$0xff]
    %v366 = vld [vmem:[#allocation2 + $0xab8] sm:$0xff]
    %v367 = vld [vmem:[#allocation2 + $0xac0] sm:$0xff]
    %v368 = vld [vmem:[#allocation2 + $0xac8] sm:$0xff]
    %v369 = vld [vmem:[#allocation2 + $0xad0] sm:$0xff]
    %v370 = vld [vmem:[#allocation2 + $0xad8] sm:$0xff]
    %v371 = vld [vmem:[#allocation2 + $0xae0] sm:$0xff]
    %v372 = vld [vmem:[#allocation2 + $0xae8] sm:$0xff]
    %v373 = vld [vmem:[#allocation2 + $0xaf0] sm:$0xff]
    %v374 = vld [vmem:[#allocation2 + $0xaf8] sm:$0xff]
    %v375 = vld [vmem:[#allocation2 + $0xb00] sm:$0xff]
    %v376 = vld [vmem:[#allocation2 + $0xb08] sm:$0xff]
    %v377 = vld [vmem:[#allocation2 + $0xb10] sm:$0xff]
    %v378 = vld [vmem:[#allocation2 + $0xb18] sm:$0xff]
    %v379 = vld [vmem:[#allocation2 + $0xb20] sm:$0xff]
    %v380 = vld [vmem:[#allocation2 + $0xb28] sm:$0xff]
    %v381 = vld [vmem:[#allocation2 + $0xb30] sm:$0xff]
    %v382 = vld [vmem:[#allocation2 + $0xb38] sm:$0xff]
    %v383 = vld [vmem:[#allocation2 + $0xb40] sm:$0xff]
    %v384 = vld [vmem:[#allocation2 + $0xb48] sm:$0xff]
    %v385 = vld [vmem:[#allocation2 + $0xb50] sm:$0xff]
    %v386 = vld [vmem:[#allocation2 + $0xb58] sm:$0xff]
    %v387 = vld [vmem:[#allocation2 + $0xb60] sm:$0xff]
    %v388 = vld [vmem:[#allocation2 + $0xb68] sm:$0xff]
    %v389 = vld [vmem:[#allocation2 + $0xb70] sm:$0xff]
    %v390 = vld [vmem:[#allocation2 + $0xb78] sm:$0xff]
    %v391 = vld [vmem:[#allocation2 + $0xb80] sm:$0xff]
    %v392 = vld [vmem:[#allocation2 + $0xb88] sm:$0xff]
    %v393 = vld [vmem:[#allocation2 + $0xb90] sm:$0xff]
    %v394 = vld [vmem:[#allocation2 + $0xb98] sm:$0xff]
    %v395 = vld [vmem:[#allocation2 + $0xba0] sm:$0xff]
    %v396 = vld [vmem:[#allocation2 + $0xba8] sm:$0xff]
    %v397 = vld [vmem:[#allocation2 + $0xbb0] sm:$0xff]
    %v398 = vld [vmem:[#allocation2 + $0xbb8] sm:$0xff]
    %v399 = vld [vmem:[#allocation2 + $0xbc0] sm:$0xff]
    %v400 = vld [vmem:[#allocation2 + $0xbc8] sm:$0xff]
    %v401 = vld [vmem:[#allocation2 + $0xbd0] sm:$0xff]
    %v402 = vld [vmem:[#allocation2 + $0xbd8] sm:$0xff]
    %v403 = vld [vmem:[#allocation2 + $0xbe0] sm:$0xff]
    %v404 = vld [vmem:[#allocation2 + $0xbe8] sm:$0xff]
    %v405 = vld [vmem:[#allocation2 + $0xbf0] sm:$0xff]
    %v406 = vld [vmem:[#allocation2 + $0xbf8] sm:$0xff]
    %v407 = vld [vmem:[#allocation2 + $0xc00] sm:$0xff]
    %v408 = vld [vmem:[#allocation2 + $0xc08] sm:$0xff]
    %v409 = vld [vmem:[#allocation2 + $0xc10] sm:$0xff]
    %v410 = vld [vmem:[#allocation2 + $0xc18] sm:$0xff]
    %v411 = vld [vmem:[#allocation2 + $0xc20] sm:$0xff]
    %v412 = vld [vmem:[#allocation2 + $0xc28] sm:$0xff]
    %v413 = vld [vmem:[#allocation2 + $0xc30] sm:$0xff]
    %v414 = vld [vmem:[#allocation2 + $0xc38] sm:$0xff]
    %v415 = vld [vmem:[#allocation2 + $0xc40] sm:$0xff]
    %v416 = vld [vmem:[#allocation2 + $0xc48] sm:$0xff]
    %v417 = vld [vmem:[#allocation2 + $0xc50] sm:$0xff]
    %v418 = vld [vmem:[#allocation2 + $0xc58] sm:$0xff]
    %v419 = vld [vmem:[#allocation2 + $0xc60] sm:$0xff]
    %v420 = vld [vmem:[#allocation2 + $0xc68] sm:$0xff]
    %v421 = vld [vmem:[#allocation2 + $0xc70] sm:$0xff]
    %v422 = vld [vmem:[#allocation2 + $0xc78] sm:$0xff]
    %v423 = vld [vmem:[#allocation2 + $0xc80] sm:$0xff]
    %v424 = vld [vmem:[#allocation2 + $0xc88] sm:$0xff]
    %v425 = vld [vmem:[#allocation2 + $0xc90] sm:$0xff]
    %v426 = vld [vmem:[#allocation2 + $0xc98] sm:$0xff]
    %v427 = vld [vmem:[#allocation2 + $0xca0] sm:$0xff]
    %v428 = vld [vmem:[#allocation2 + $0xca8] sm:$0xff]
    %v429 = vld [vmem:[#allocation2 + $0xcb0] sm:$0xff]
    %v430 = vld [vmem:[#allocation2 + $0xcb8] sm:$0xff]
    %v431 = vld [vmem:[#allocation2 + $0xcc0] sm:$0xff]
    %v432 = vld [vmem:[#allocation2 + $0xcc8] sm:$0xff]
    %v433 = vld [vmem:[#allocation2 + $0xcd0] sm:$0xff]
    %v434 = vld [vmem:[#allocation2 + $0xcd8] sm:$0xff]
    %v435 = vld [vmem:[#allocation2 + $0xce0] sm:$0xff]
    %v436 = vld [vmem:[#allocation2 + $0xce8] sm:$0xff]
    %v437 = vld [vmem:[#allocation2 + $0xcf0] sm:$0xff]
    %v438 = vld [vmem:[#allocation2 + $0xcf8] sm:$0xff]
    %v439 = vld [vmem:[#allocation2 + $0xd00] sm:$0xff]
    %v440 = vld [vmem:[#allocation2 + $0xd08] sm:$0xff]
    %v441 = vld [vmem:[#allocation2 + $0xd10] sm:$0xff]
    %v442 = vld [vmem:[#allocation2 + $0xd18] sm:$0xff]
    %v443 = vld [vmem:[#allocation2 + $0xd20] sm:$0xff]
    %v444 = vld [vmem:[#allocation2 + $0xd28] sm:$0xff]
    %v445 = vld [vmem:[#allocation2 + $0xd30] sm:$0xff]
    %v446 = vld [vmem:[#allocation2 + $0xd38] sm:$0xff]
    %v447 = vld [vmem:[#allocation2 + $0xd40] sm:$0xff]
    %v448 = vld [vmem:[#allocation2 + $0xd48] sm:$0xff]
    %v449 = vld [vmem:[#allocation2 + $0xd50] sm:$0xff]
    %v450 = vld [vmem:[#allocation2 + $0xd58] sm:$0xff]
    %v451 = vld [vmem:[#allocation2 + $0xd60] sm:$0xff]
    %v452 = vld [vmem:[#allocation2 + $0xd68] sm:$0xff]
    %v453 = vld [vmem:[#allocation2 + $0xd70] sm:$0xff]
    %v454 = vld [vmem:[#allocation2 + $0xd78] sm:$0xff]
    %v455 = vld [vmem:[#allocation2 + $0xd80] sm:$0xff]
    %v456 = vld [vmem:[#allocation2 + $0xd88] sm:$0xff]
    %v457 = vld [vmem:[#allocation2 + $0xd90] sm:$0xff]
    %v458 = vld [vmem:[#allocation2 + $0xd98] sm:$0xff]
    %v459 = vld [vmem:[#allocation2 + $0xda0] sm:$0xff]
    %v460 = vld [vmem:[#allocation2 + $0xda8] sm:$0xff]
    %v461 = vld [vmem:[#allocation2 + $0xdb0] sm:$0xff]
    %v462 = vld [vmem:[#allocation2 + $0xdb8] sm:$0xff]
    %v463 = vld [vmem:[#allocation2 + $0xdc0] sm:$0xff]
    %v464 = vld [vmem:[#allocation2 + $0xdc8] sm:$0xff]
    %v465 = vld [vmem:[#allocation2 + $0xdd0] sm:$0xff]
    %v466 = vld [vmem:[#allocation2 + $0xdd8] sm:$0xff]
    %v467 = vld [vmem:[#allocation2 + $0xde0] sm:$0xff]
    %v468 = vld [vmem:[#allocation2 + $0xde8] sm:$0xff]
    %v469 = vld [vmem:[#allocation2 + $0xdf0] sm:$0xff]
    %v470 = vld [vmem:[#allocation2 + $0xdf8] sm:$0xff]
    %v471 = vld [vmem:[#allocation2 + $0xe00] sm:$0xff]
    %v472 = vld [vmem:[#allocation2 + $0xe08] sm:$0xff]
    %v473 = vld [vmem:[#allocation2 + $0xe10] sm:$0xff]
    %v474 = vld [vmem:[#allocation2 + $0xe18] sm:$0xff]
    %v475 = vld [vmem:[#allocation2 + $0xe20] sm:$0xff]
    %v476 = vld [vmem:[#allocation2 + $0xe28] sm:$0xff]
    %v477 = vld [vmem:[#allocation2 + $0xe30] sm:$0xff]
    %v478 = vld [vmem:[#allocation2 + $0xe38] sm:$0xff]
    %v479 = vld [vmem:[#allocation2 + $0xe40] sm:$0xff]
    %v480 = vld [vmem:[#allocation2 + $0xe48] sm:$0xff]
    %v481 = vld [vmem:[#allocation2 + $0xe50] sm:$0xff]
    %v482 = vld [vmem:[#allocation2 + $0xe58] sm:$0xff]
    %v483 = vld [vmem:[#allocation2 + $0xe60] sm:$0xff]
    %v484 = vld [vmem:[#allocation2 + $0xe68] sm:$0xff]
    %v485 = vld [vmem:[#allocation2 + $0xe70] sm:$0xff]
    %v486 = vld [vmem:[#allocation2 + $0xe78] sm:$0xff]
    %v487 = vld [vmem:[#allocation2 + $0xe80] sm:$0xff]
    %v488 = vld [vmem:[#allocation2 + $0xe88] sm:$0xff]
    %v489 = vld [vmem:[#allocation2 + $0xe90] sm:$0xff]
    %v490 = vld [vmem:[#allocation2 + $0xe98] sm:$0xff]
    %v491 = vld [vmem:[#allocation2 + $0xea0] sm:$0xff]
    %v492 = vld [vmem:[#allocation2 + $0xea8] sm:$0xff]
    %v493 = vld [vmem:[#allocation2 + $0xeb0] sm:$0xff]
    %v494 = vld [vmem:[#allocation2 + $0xeb8] sm:$0xff]
    %v495 = vld [vmem:[#allocation2 + $0xec0] sm:$0xff]
    %v496 = vld [vmem:[#allocation2 + $0xec8] sm:$0xff]
    %v497 = vld [vmem:[#allocation2 + $0xed0] sm:$0xff]
    %v498 = vld [vmem:[#allocation2 + $0xed8] sm:$0xff]
    %v499 = vld [vmem:[#allocation2 + $0xee0] sm:$0xff]
    %v500 = vld [vmem:[#allocation2 + $0xee8] sm:$0xff]
    %v501 = vld [vmem:[#allocation2 + $0xef0] sm:$0xff]
    %v502 = vld [vmem:[#allocation2 + $0xef8] sm:$0xff]
    %v503 = vld [vmem:[#allocation2 + $0xf00] sm:$0xff]
    %v504 = vld [vmem:[#allocation2 + $0xf08] sm:$0xff]
    %v505 = vld [vmem:[#allocation2 + $0xf10] sm:$0xff]
    %v506 = vld [vmem:[#allocation2 + $0xf18] sm:$0xff]
    %v507 = vld [vmem:[#allocation2 + $0xf20] sm:$0xff]
    %v508 = vld [vmem:[#allocation2 + $0xf28] sm:$0xff]
    %v509 = vld [vmem:[#allocation2 + $0xf30] sm:$0xff]
    %v510 = vld [vmem:[#allocation2 + $0xf38] sm:$0xff]
    %v511 = vld [vmem:[#allocation2 + $0xf40] sm:$0xff]
    %v512 = vld [vmem:[#allocation2 + $0xf48] sm:$0xff]
    %v513 = vld [vmem:[#allocation2 + $0xf50] sm:$0xff]
    %v514 = vld [vmem:[#allocation2 + $0xf58] sm:$0xff]
    %v515 = vld [vmem:[#allocation2 + $0xf60] sm:$0xff]
    %v516 = vld [vmem:[#allocation2 + $0xf68] sm:$0xff]
    %v517 = vld [vmem:[#allocation2 + $0xf70] sm:$0xff]
    %v518 = vld [vmem:[#allocation2 + $0xf78] sm:$0xff]
    %v519 = vld [vmem:[#allocation2 + $0xf80] sm:$0xff]
    %v520 = vld [vmem:[#allocation2 + $0xf88] sm:$0xff]
    %v521 = vld [vmem:[#allocation2 + $0xf90] sm:$0xff]
    %v522 = vld [vmem:[#allocation2 + $0xf98] sm:$0xff]
    %v523 = vld [vmem:[#allocation2 + $0xfa0] sm:$0xff]
    %v524 = vld [vmem:[#allocation2 + $0xfa8] sm:$0xff]
    %v525 = vld [vmem:[#allocation2 + $0xfb0] sm:$0xff]
    %v526 = vld [vmem:[#allocation2 + $0xfb8] sm:$0xff]
    %v527 = vld [vmem:[#allocation2 + $0xfc0] sm:$0xff]
    %v528 = vld [vmem:[#allocation2 + $0xfc8] sm:$0xff]
    %v529 = vld [vmem:[#allocation2 + $0xfd0] sm:$0xff]
    %v530 = vld [vmem:[#allocation2 + $0xfd8] sm:$0xff]
    %v531 = vld [vmem:[#allocation2 + $0xfe0] sm:$0xff]
    %v532 = vld [vmem:[#allocation2 + $0xfe8] sm:$0xff]
    %v533 = vld [vmem:[#allocation2 + $0xff0] sm:$0xff]
    %v534 = vld [vmem:[#allocation2 + $0xff8] sm:$0xff]
    %v535 = vadd.f32 %v23, %v24
    %536 = vadd.xlane.f32.xlu0 %v535
    %v537 = vpop.xlane.xlu0 %536
    %v538 = vadd.f32 %v25, %v26
    %539 = vadd.xlane.f32.xlu0 %v538
    %v540 = vpop.xlane.xlu0 %539
    %v541 = vadd.f32 %v27, %v28
    %542 = vadd.xlane.f32.xlu0 %v541
    %v543 = vpop.xlane.xlu0 %542
    %v544 = vadd.f32 %v29, %v30
    %545 = vadd.xlane.f32.xlu0 %v544
    %v546 = vpop.xlane.xlu0 %545
    %v547 = vadd.f32 %v31, %v32
    %548 = vadd.xlane.f32.xlu0 %v547
    %v549 = vpop.xlane.xlu0 %548
    %v550 = vadd.f32 %v33, %v34
    %551 = vadd.xlane.f32.xlu0 %v550
    %v552 = vpop.xlane.xlu0 %551
    %v553 = vadd.f32 %v35, %v36
    %554 = vadd.xlane.f32.xlu0 %v553
    %v555 = vpop.xlane.xlu0 %554
    %v556 = vadd.f32 %v37, %v38
    %557 = vadd.xlane.f32.xlu0 %v556
    %v558 = vpop.xlane.xlu0 %557
    %v559 = vadd.f32 %v39, %v40
    %560 = vadd.xlane.f32.xlu0 %v559
    %v561 = vpop.xlane.xlu0 %560
    %v562 = vadd.f32 %v41, %v42
    %563 = vadd.xlane.f32.xlu0 %v562
    %v564 = vpop.xlane.xlu0 %563
    %v565 = vadd.f32 %v43, %v44
    %566 = vadd.xlane.f32.xlu0 %v565
    %v567 = vpop.xlane.xlu0 %566
    %v568 = vadd.f32 %v45, %v46
    %569 = vadd.xlane.f32.xlu0 %v568
    %v570 = vpop.xlane.xlu0 %569
    %v571 = vadd.f32 %v47, %v48
    %572 = vadd.xlane.f32.xlu0 %v571
    %v573 = vpop.xlane.xlu0 %572
    %v574 = vadd.f32 %v49, %v50
    %575 = vadd.xlane.f32.xlu0 %v574
    %v576 = vpop.xlane.xlu0 %575
    %v577 = vadd.f32 %v51, %v52
    %578 = vadd.xlane.f32.xlu0 %v577
    %v579 = vpop.xlane.xlu0 %578
    %v580 = vadd.f32 %v53, %v54
    %581 = vadd.xlane.f32.xlu0 %v580
    %v582 = vpop.xlane.xlu0 %581
    %v583 = vadd.f32 %v55, %v56
    %584 = vadd.xlane.f32.xlu0 %v583
    %v585 = vpop.xlane.xlu0 %584
    %v586 = vadd.f32 %v57, %v58
    %587 = vadd.xlane.f32.xlu0 %v586
    %v588 = vpop.xlane.xlu0 %587
    %v589 = vadd.f32 %v59, %v60
    %590 = vadd.xlane.f32.xlu0 %v589
    %v591 = vpop.xlane.xlu0 %590
    %v592 = vadd.f32 %v61, %v62
    %593 = vadd.xlane.f32.xlu0 %v592
    %v594 = vpop.xlane.xlu0 %593
    %v595 = vadd.f32 %v63, %v64
    %596 = vadd.xlane.f32.xlu0 %v595
    %v597 = vpop.xlane.xlu0 %596
    %v598 = vadd.f32 %v65, %v66
    %599 = vadd.xlane.f32.xlu0 %v598
    %v600 = vpop.xlane.xlu0 %599
    %v601 = vadd.f32 %v67, %v68
    %602 = vadd.xlane.f32.xlu0 %v601
    %v603 = vpop.xlane.xlu0 %602
    %v604 = vadd.f32 %v69, %v70
    %605 = vadd.xlane.f32.xlu0 %v604
    %v606 = vpop.xlane.xlu0 %605
    %v607 = vadd.f32 %v71, %v72
    %608 = vadd.xlane.f32.xlu0 %v607
    %v609 = vpop.xlane.xlu0 %608
    %v610 = vadd.f32 %v73, %v74
    %611 = vadd.xlane.f32.xlu0 %v610
    %v612 = vpop.xlane.xlu0 %611
    %v613 = vadd.f32 %v75, %v76
    %614 = vadd.xlane.f32.xlu0 %v613
    %v615 = vpop.xlane.xlu0 %614
    %v616 = vadd.f32 %v77, %v78
    %617 = vadd.xlane.f32.xlu0 %v616
    %v618 = vpop.xlane.xlu0 %617
    %v619 = vadd.f32 %v79, %v80
    %620 = vadd.xlane.f32.xlu0 %v619
    %v621 = vpop.xlane.xlu0 %620
    %v622 = vadd.f32 %v81, %v82
    %623 = vadd.xlane.f32.xlu0 %v622
    %v624 = vpop.xlane.xlu0 %623
    %v625 = vadd.f32 %v83, %v84
    %626 = vadd.xlane.f32.xlu0 %v625
    %v627 = vpop.xlane.xlu0 %626
    %v628 = vadd.f32 %v85, %v86
    %629 = vadd.xlane.f32.xlu0 %v628
    %v630 = vpop.xlane.xlu0 %629
    %v631 = vadd.f32 %v87, %v88
    %632 = vadd.xlane.f32.xlu0 %v631
    %v633 = vpop.xlane.xlu0 %632
    %v634 = vadd.f32 %v89, %v90
    %635 = vadd.xlane.f32.xlu0 %v634
    %v636 = vpop.xlane.xlu0 %635
    %v637 = vadd.f32 %v91, %v92
    %638 = vadd.xlane.f32.xlu0 %v637
    %v639 = vpop.xlane.xlu0 %638
    %v640 = vadd.f32 %v93, %v94
    %641 = vadd.xlane.f32.xlu0 %v640
    %v642 = vpop.xlane.xlu0 %641
    %v643 = vadd.f32 %v95, %v96
    %644 = vadd.xlane.f32.xlu0 %v643
    %v645 = vpop.xlane.xlu0 %644
    %v646 = vadd.f32 %v97, %v98
    %647 = vadd.xlane.f32.xlu0 %v646
    %v648 = vpop.xlane.xlu0 %647
    %v649 = vadd.f32 %v99, %v100
    %650 = vadd.xlane.f32.xlu0 %v649
    %v651 = vpop.xlane.xlu0 %650
    %v652 = vadd.f32 %v101, %v102
    %653 = vadd.xlane.f32.xlu0 %v652
    %v654 = vpop.xlane.xlu0 %653
    %v655 = vadd.f32 %v103, %v104
    %656 = vadd.xlane.f32.xlu0 %v655
    %v657 = vpop.xlane.xlu0 %656
    %v658 = vadd.f32 %v105, %v106
    %659 = vadd.xlane.f32.xlu0 %v658
    %v660 = vpop.xlane.xlu0 %659
    %v661 = vadd.f32 %v107, %v108
    %662 = vadd.xlane.f32.xlu0 %v661
    %v663 = vpop.xlane.xlu0 %662
    %v664 = vadd.f32 %v109, %v110
    %665 = vadd.xlane.f32.xlu0 %v664
    %v666 = vpop.xlane.xlu0 %665
    %v667 = vadd.f32 %v111, %v112
    %668 = vadd.xlane.f32.xlu0 %v667
    %v669 = vpop.xlane.xlu0 %668
    %v670 = vadd.f32 %v113, %v114
    %671 = vadd.xlane.f32.xlu0 %v670
    %v672 = vpop.xlane.xlu0 %671
    %v673 = vadd.f32 %v115, %v116
    %674 = vadd.xlane.f32.xlu0 %v673
    %v675 = vpop.xlane.xlu0 %674
    %v676 = vadd.f32 %v117, %v118
    %677 = vadd.xlane.f32.xlu0 %v676
    %v678 = vpop.xlane.xlu0 %677
    %v679 = vadd.f32 %v119, %v120
    %680 = vadd.xlane.f32.xlu0 %v679
    %v681 = vpop.xlane.xlu0 %680
    %v682 = vadd.f32 %v121, %v122
    %683 = vadd.xlane.f32.xlu0 %v682
    %v684 = vpop.xlane.xlu0 %683
    %v685 = vadd.f32 %v123, %v124
    %686 = vadd.xlane.f32.xlu0 %v685
    %v687 = vpop.xlane.xlu0 %686
    %v688 = vadd.f32 %v125, %v126
    %689 = vadd.xlane.f32.xlu0 %v688
    %v690 = vpop.xlane.xlu0 %689
    %v691 = vadd.f32 %v127, %v128
    %692 = vadd.xlane.f32.xlu0 %v691
    %v693 = vpop.xlane.xlu0 %692
    %v694 = vadd.f32 %v129, %v130
    %695 = vadd.xlane.f32.xlu0 %v694
    %v696 = vpop.xlane.xlu0 %695
    %v697 = vadd.f32 %v131, %v132
    %698 = vadd.xlane.f32.xlu0 %v697
    %v699 = vpop.xlane.xlu0 %698
    %v700 = vadd.f32 %v133, %v134
    %701 = vadd.xlane.f32.xlu0 %v700
    %v702 = vpop.xlane.xlu0 %701
    %v703 = vadd.f32 %v135, %v136
    %704 = vadd.xlane.f32.xlu0 %v703
    %v705 = vpop.xlane.xlu0 %704
    %v706 = vadd.f32 %v137, %v138
    %707 = vadd.xlane.f32.xlu0 %v706
    %v708 = vpop.xlane.xlu0 %707
    %v709 = vadd.f32 %v139, %v140
    %710 = vadd.xlane.f32.xlu0 %v709
    %v711 = vpop.xlane.xlu0 %710
    %v712 = vadd.f32 %v141, %v142
    %713 = vadd.xlane.f32.xlu0 %v712
    %v714 = vpop.xlane.xlu0 %713
    %v715 = vadd.f32 %v143, %v144
    %716 = vadd.xlane.f32.xlu0 %v715
    %v717 = vpop.xlane.xlu0 %716
    %v718 = vadd.f32 %v145, %v146
    %719 = vadd.xlane.f32.xlu0 %v718
    %v720 = vpop.xlane.xlu0 %719
    %v721 = vadd.f32 %v147, %v148
    %722 = vadd.xlane.f32.xlu0 %v721
    %v723 = vpop.xlane.xlu0 %722
    %v724 = vadd.f32 %v149, %v150
    %725 = vadd.xlane.f32.xlu0 %v724
    %v726 = vpop.xlane.xlu0 %725
    %v727 = vadd.f32 %v151, %v152
    %728 = vadd.xlane.f32.xlu0 %v727
    %v729 = vpop.xlane.xlu0 %728
    %v730 = vadd.f32 %v153, %v154
    %731 = vadd.xlane.f32.xlu0 %v730
    %v732 = vpop.xlane.xlu0 %731
    %v733 = vadd.f32 %v155, %v156
    %734 = vadd.xlane.f32.xlu0 %v733
    %v735 = vpop.xlane.xlu0 %734
    %v736 = vadd.f32 %v157, %v158
    %737 = vadd.xlane.f32.xlu0 %v736
    %v738 = vpop.xlane.xlu0 %737
    %v739 = vadd.f32 %v159, %v160
    %740 = vadd.xlane.f32.xlu0 %v739
    %v741 = vpop.xlane.xlu0 %740
    %v742 = vadd.f32 %v161, %v162
    %743 = vadd.xlane.f32.xlu0 %v742
    %v744 = vpop.xlane.xlu0 %743
    %v745 = vadd.f32 %v163, %v164
    %746 = vadd.xlane.f32.xlu0 %v745
    %v747 = vpop.xlane.xlu0 %746
    %v748 = vadd.f32 %v165, %v166
    %749 = vadd.xlane.f32.xlu0 %v748
    %v750 = vpop.xlane.xlu0 %749
    %v751 = vadd.f32 %v167, %v168
    %752 = vadd.xlane.f32.xlu0 %v751
    %v753 = vpop.xlane.xlu0 %752
    %v754 = vadd.f32 %v169, %v170
    %755 = vadd.xlane.f32.xlu0 %v754
    %v756 = vpop.xlane.xlu0 %755
    %v757 = vadd.f32 %v171, %v172
    %758 = vadd.xlane.f32.xlu0 %v757
    %v759 = vpop.xlane.xlu0 %758
    %v760 = vadd.f32 %v173, %v174
    %761 = vadd.xlane.f32.xlu0 %v760
    %v762 = vpop.xlane.xlu0 %761
    %v763 = vadd.f32 %v175, %v176
    %764 = vadd.xlane.f32.xlu0 %v763
    %v765 = vpop.xlane.xlu0 %764
    %v766 = vadd.f32 %v177, %v178
    %767 = vadd.xlane.f32.xlu0 %v766
    %v768 = vpop.xlane.xlu0 %767
    %v769 = vadd.f32 %v179, %v180
    %770 = vadd.xlane.f32.xlu0 %v769
    %v771 = vpop.xlane.xlu0 %770
    %v772 = vadd.f32 %v181, %v182
    %773 = vadd.xlane.f32.xlu0 %v772
    %v774 = vpop.xlane.xlu0 %773
    %v775 = vadd.f32 %v183, %v184
    %776 = vadd.xlane.f32.xlu0 %v775
    %v777 = vpop.xlane.xlu0 %776
    %v778 = vadd.f32 %v185, %v186
    %779 = vadd.xlane.f32.xlu0 %v778
    %v780 = vpop.xlane.xlu0 %779
    %v781 = vadd.f32 %v187, %v188
    %782 = vadd.xlane.f32.xlu0 %v781
    %v783 = vpop.xlane.xlu0 %782
    %v784 = vadd.f32 %v189, %v190
    %785 = vadd.xlane.f32.xlu0 %v784
    %v786 = vpop.xlane.xlu0 %785
    %v787 = vadd.f32 %v191, %v192
    %788 = vadd.xlane.f32.xlu0 %v787
    %v789 = vpop.xlane.xlu0 %788
    %v790 = vadd.f32 %v193, %v194
    %791 = vadd.xlane.f32.xlu0 %v790
    %v792 = vpop.xlane.xlu0 %791
    %v793 = vadd.f32 %v195, %v196
    %794 = vadd.xlane.f32.xlu0 %v793
    %v795 = vpop.xlane.xlu0 %794
    %v796 = vadd.f32 %v197, %v198
    %797 = vadd.xlane.f32.xlu0 %v796
    %v798 = vpop.xlane.xlu0 %797
    %v799 = vadd.f32 %v199, %v200
    %800 = vadd.xlane.f32.xlu0 %v799
    %v801 = vpop.xlane.xlu0 %800
    %v802 = vadd.f32 %v201, %v202
    %803 = vadd.xlane.f32.xlu0 %v802
    %v804 = vpop.xlane.xlu0 %803
    %v805 = vadd.f32 %v203, %v204
    %806 = vadd.xlane.f32.xlu0 %v805
    %v807 = vpop.xlane.xlu0 %806
    %v808 = vadd.f32 %v205, %v206
    %809 = vadd.xlane.f32.xlu0 %v808
    %v810 = vpop.xlane.xlu0 %809
    %v811 = vadd.f32 %v207, %v208
    %812 = vadd.xlane.f32.xlu0 %v811
    %v813 = vpop.xlane.xlu0 %812
    %v814 = vadd.f32 %v209, %v210
    %815 = vadd.xlane.f32.xlu0 %v814
    %v816 = vpop.xlane.xlu0 %815
    %v817 = vadd.f32 %v211, %v212
    %818 = vadd.xlane.f32.xlu0 %v817
    %v819 = vpop.xlane.xlu0 %818
    %v820 = vadd.f32 %v213, %v214
    %821 = vadd.xlane.f32.xlu0 %v820
    %v822 = vpop.xlane.xlu0 %821
    %v823 = vadd.f32 %v215, %v216
    %824 = vadd.xlane.f32.xlu0 %v823
    %v825 = vpop.xlane.xlu0 %824
    %v826 = vadd.f32 %v217, %v218
    %827 = vadd.xlane.f32.xlu0 %v826
    %v828 = vpop.xlane.xlu0 %827
    %v829 = vadd.f32 %v219, %v220
    %830 = vadd.xlane.f32.xlu0 %v829
    %v831 = vpop.xlane.xlu0 %830
    %v832 = vadd.f32 %v221, %v222
    %833 = vadd.xlane.f32.xlu0 %v832
    %v834 = vpop.xlane.xlu0 %833
    %v835 = vadd.f32 %v223, %v224
    %836 = vadd.xlane.f32.xlu0 %v835
    %v837 = vpop.xlane.xlu0 %836
    %v838 = vadd.f32 %v225, %v226
    %839 = vadd.xlane.f32.xlu0 %v838
    %v840 = vpop.xlane.xlu0 %839
    %v841 = vadd.f32 %v227, %v228
    %842 = vadd.xlane.f32.xlu0 %v841
    %v843 = vpop.xlane.xlu0 %842
    %v844 = vadd.f32 %v229, %v230
    %845 = vadd.xlane.f32.xlu0 %v844
    %v846 = vpop.xlane.xlu0 %845
    %v847 = vadd.f32 %v231, %v232
    %848 = vadd.xlane.f32.xlu0 %v847
    %v849 = vpop.xlane.xlu0 %848
    %v850 = vadd.f32 %v233, %v234
    %851 = vadd.xlane.f32.xlu0 %v850
    %v852 = vpop.xlane.xlu0 %851
    %v853 = vadd.f32 %v235, %v236
    %854 = vadd.xlane.f32.xlu0 %v853
    %v855 = vpop.xlane.xlu0 %854
    %v856 = vadd.f32 %v237, %v238
    %857 = vadd.xlane.f32.xlu0 %v856
    %v858 = vpop.xlane.xlu0 %857
    %v859 = vadd.f32 %v239, %v240
    %860 = vadd.xlane.f32.xlu0 %v859
    %v861 = vpop.xlane.xlu0 %860
    %v862 = vadd.f32 %v241, %v242
    %863 = vadd.xlane.f32.xlu0 %v862
    %v864 = vpop.xlane.xlu0 %863
    %v865 = vadd.f32 %v243, %v244
    %866 = vadd.xlane.f32.xlu0 %v865
    %v867 = vpop.xlane.xlu0 %866
    %v868 = vadd.f32 %v245, %v246
    %869 = vadd.xlane.f32.xlu0 %v868
    %v870 = vpop.xlane.xlu0 %869
    %v871 = vadd.f32 %v247, %v248
    %872 = vadd.xlane.f32.xlu0 %v871
    %v873 = vpop.xlane.xlu0 %872
    %v874 = vadd.f32 %v249, %v250
    %875 = vadd.xlane.f32.xlu0 %v874
    %v876 = vpop.xlane.xlu0 %875
    %v877 = vadd.f32 %v251, %v252
    %878 = vadd.xlane.f32.xlu0 %v877
    %v879 = vpop.xlane.xlu0 %878
    %v880 = vadd.f32 %v253, %v254
    %881 = vadd.xlane.f32.xlu0 %v880
    %v882 = vpop.xlane.xlu0 %881
    %v883 = vadd.f32 %v255, %v256
    %884 = vadd.xlane.f32.xlu0 %v883
    %v885 = vpop.xlane.xlu0 %884
    %v886 = vadd.f32 %v257, %v258
    %887 = vadd.xlane.f32.xlu0 %v886
    %v888 = vpop.xlane.xlu0 %887
    %v889 = vadd.f32 %v259, %v260
    %890 = vadd.xlane.f32.xlu0 %v889
    %v891 = vpop.xlane.xlu0 %890
    %v892 = vadd.f32 %v261, %v262
    %893 = vadd.xlane.f32.xlu0 %v892
    %v894 = vpop.xlane.xlu0 %893
    %v895 = vadd.f32 %v263, %v264
    %896 = vadd.xlane.f32.xlu0 %v895
    %v897 = vpop.xlane.xlu0 %896
    %v898 = vadd.f32 %v265, %v266
    %899 = vadd.xlane.f32.xlu0 %v898
    %v900 = vpop.xlane.xlu0 %899
    %v901 = vadd.f32 %v267, %v268
    %902 = vadd.xlane.f32.xlu0 %v901
    %v903 = vpop.xlane.xlu0 %902
    %v904 = vadd.f32 %v269, %v270
    %905 = vadd.xlane.f32.xlu0 %v904
    %v906 = vpop.xlane.xlu0 %905
    %v907 = vadd.f32 %v271, %v272
    %908 = vadd.xlane.f32.xlu0 %v907
    %v909 = vpop.xlane.xlu0 %908
    %v910 = vadd.f32 %v273, %v274
    %911 = vadd.xlane.f32.xlu0 %v910
    %v912 = vpop.xlane.xlu0 %911
    %v913 = vadd.f32 %v275, %v276
    %914 = vadd.xlane.f32.xlu0 %v913
    %v915 = vpop.xlane.xlu0 %914
    %v916 = vadd.f32 %v277, %v278
    %917 = vadd.xlane.f32.xlu0 %v916
    %v918 = vpop.xlane.xlu0 %917
    %v919 = vadd.f32 %v279, %v280
    %920 = vadd.xlane.f32.xlu0 %v919
    %v921 = vpop.xlane.xlu0 %920
    %v922 = vadd.f32 %v281, %v282
    %923 = vadd.xlane.f32.xlu0 %v922
    %v924 = vpop.xlane.xlu0 %923
    %v925 = vadd.f32 %v283, %v284
    %926 = vadd.xlane.f32.xlu0 %v925
    %v927 = vpop.xlane.xlu0 %926
    %v928 = vadd.f32 %v285, %v286
    %929 = vadd.xlane.f32.xlu0 %v928
    %v930 = vpop.xlane.xlu0 %929
    %v931 = vadd.f32 %v287, %v288
    %932 = vadd.xlane.f32.xlu0 %v931
    %v933 = vpop.xlane.xlu0 %932
    %v934 = vadd.f32 %v289, %v290
    %935 = vadd.xlane.f32.xlu0 %v934
    %v936 = vpop.xlane.xlu0 %935
    %v937 = vadd.f32 %v291, %v292
    %938 = vadd.xlane.f32.xlu0 %v937
    %v939 = vpop.xlane.xlu0 %938
    %v940 = vadd.f32 %v293, %v294
    %941 = vadd.xlane.f32.xlu0 %v940
    %v942 = vpop.xlane.xlu0 %941
    %v943 = vadd.f32 %v295, %v296
    %944 = vadd.xlane.f32.xlu0 %v943
    %v945 = vpop.xlane.xlu0 %944
    %v946 = vadd.f32 %v297, %v298
    %947 = vadd.xlane.f32.xlu0 %v946
    %v948 = vpop.xlane.xlu0 %947
    %v949 = vadd.f32 %v299, %v300
    %950 = vadd.xlane.f32.xlu0 %v949
    %v951 = vpop.xlane.xlu0 %950
    %v952 = vadd.f32 %v301, %v302
    %953 = vadd.xlane.f32.xlu0 %v952
    %v954 = vpop.xlane.xlu0 %953
    %v955 = vadd.f32 %v303, %v304
    %956 = vadd.xlane.f32.xlu0 %v955
    %v957 = vpop.xlane.xlu0 %956
    %v958 = vadd.f32 %v305, %v306
    %959 = vadd.xlane.f32.xlu0 %v958
    %v960 = vpop.xlane.xlu0 %959
    %v961 = vadd.f32 %v307, %v308
    %962 = vadd.xlane.f32.xlu0 %v961
    %v963 = vpop.xlane.xlu0 %962
    %v964 = vadd.f32 %v309, %v310
    %965 = vadd.xlane.f32.xlu0 %v964
    %v966 = vpop.xlane.xlu0 %965
    %v967 = vadd.f32 %v311, %v312
    %968 = vadd.xlane.f32.xlu0 %v967
    %v969 = vpop.xlane.xlu0 %968
    %v970 = vadd.f32 %v313, %v314
    %971 = vadd.xlane.f32.xlu0 %v970
    %v972 = vpop.xlane.xlu0 %971
    %v973 = vadd.f32 %v315, %v316
    %974 = vadd.xlane.f32.xlu0 %v973
    %v975 = vpop.xlane.xlu0 %974
    %v976 = vadd.f32 %v317, %v318
    %977 = vadd.xlane.f32.xlu0 %v976
    %v978 = vpop.xlane.xlu0 %977
    %v979 = vadd.f32 %v319, %v320
    %980 = vadd.xlane.f32.xlu0 %v979
    %v981 = vpop.xlane.xlu0 %980
    %v982 = vadd.f32 %v321, %v322
    %983 = vadd.xlane.f32.xlu0 %v982
    %v984 = vpop.xlane.xlu0 %983
    %v985 = vadd.f32 %v323, %v324
    %986 = vadd.xlane.f32.xlu0 %v985
    %v987 = vpop.xlane.xlu0 %986
    %v988 = vadd.f32 %v325, %v326
    %989 = vadd.xlane.f32.xlu0 %v988
    %v990 = vpop.xlane.xlu0 %989
    %v991 = vadd.f32 %v327, %v328
    %992 = vadd.xlane.f32.xlu0 %v991
    %v993 = vpop.xlane.xlu0 %992
    %v994 = vadd.f32 %v329, %v330
    %995 = vadd.xlane.f32.xlu0 %v994
    %v996 = vpop.xlane.xlu0 %995
    %v997 = vadd.f32 %v331, %v332
    %998 = vadd.xlane.f32.xlu0 %v997
    %v999 = vpop.xlane.xlu0 %998
    %v1000 = vadd.f32 %v333, %v334
    %1001 = vadd.xlane.f32.xlu0 %v1000
    %v1002 = vpop.xlane.xlu0 %1001
    %v1003 = vadd.f32 %v335, %v336
    %1004 = vadd.xlane.f32.xlu0 %v1003
    %v1005 = vpop.xlane.xlu0 %1004
    %v1006 = vadd.f32 %v337, %v338
    %1007 = vadd.xlane.f32.xlu0 %v1006
    %v1008 = vpop.xlane.xlu0 %1007
    %v1009 = vadd.f32 %v339, %v340
    %1010 = vadd.xlane.f32.xlu0 %v1009
    %v1011 = vpop.xlane.xlu0 %1010
    %v1012 = vadd.f32 %v341, %v342
    %1013 = vadd.xlane.f32.xlu0 %v1012
    %v1014 = vpop.xlane.xlu0 %1013
    %v1015 = vadd.f32 %v343, %v344
    %1016 = vadd.xlane.f32.xlu0 %v1015
    %v1017 = vpop.xlane.xlu0 %1016
    %v1018 = vadd.f32 %v345, %v346
    %1019 = vadd.xlane.f32.xlu0 %v1018
    %v1020 = vpop.xlane.xlu0 %1019
    %v1021 = vadd.f32 %v347, %v348
    %1022 = vadd.xlane.f32.xlu0 %v1021
    %v1023 = vpop.xlane.xlu0 %1022
    %v1024 = vadd.f32 %v349, %v350
    %1025 = vadd.xlane.f32.xlu0 %v1024
    %v1026 = vpop.xlane.xlu0 %1025
    %v1027 = vadd.f32 %v351, %v352
    %1028 = vadd.xlane.f32.xlu0 %v1027
    %v1029 = vpop.xlane.xlu0 %1028
    %v1030 = vadd.f32 %v353, %v354
    %1031 = vadd.xlane.f32.xlu0 %v1030
    %v1032 = vpop.xlane.xlu0 %1031
    %v1033 = vadd.f32 %v355, %v356
    %1034 = vadd.xlane.f32.xlu0 %v1033
    %v1035 = vpop.xlane.xlu0 %1034
    %v1036 = vadd.f32 %v357, %v358
    %1037 = vadd.xlane.f32.xlu0 %v1036
    %v1038 = vpop.xlane.xlu0 %1037
    %v1039 = vadd.f32 %v359, %v360
    %1040 = vadd.xlane.f32.xlu0 %v1039
    %v1041 = vpop.xlane.xlu0 %1040
    %v1042 = vadd.f32 %v361, %v362
    %1043 = vadd.xlane.f32.xlu0 %v1042
    %v1044 = vpop.xlane.xlu0 %1043
    %v1045 = vadd.f32 %v363, %v364
    %1046 = vadd.xlane.f32.xlu0 %v1045
    %v1047 = vpop.xlane.xlu0 %1046
    %v1048 = vadd.f32 %v365, %v366
    %1049 = vadd.xlane.f32.xlu0 %v1048
    %v1050 = vpop.xlane.xlu0 %1049
    %v1051 = vadd.f32 %v367, %v368
    %1052 = vadd.xlane.f32.xlu0 %v1051
    %v1053 = vpop.xlane.xlu0 %1052
    %v1054 = vadd.f32 %v369, %v370
    %1055 = vadd.xlane.f32.xlu0 %v1054
    %v1056 = vpop.xlane.xlu0 %1055
    %v1057 = vadd.f32 %v371, %v372
    %1058 = vadd.xlane.f32.xlu0 %v1057
    %v1059 = vpop.xlane.xlu0 %1058
    %v1060 = vadd.f32 %v373, %v374
    %1061 = vadd.xlane.f32.xlu0 %v1060
    %v1062 = vpop.xlane.xlu0 %1061
    %v1063 = vadd.f32 %v375, %v376
    %1064 = vadd.xlane.f32.xlu0 %v1063
    %v1065 = vpop.xlane.xlu0 %1064
    %v1066 = vadd.f32 %v377, %v378
    %1067 = vadd.xlane.f32.xlu0 %v1066
    %v1068 = vpop.xlane.xlu0 %1067
    %v1069 = vadd.f32 %v379, %v380
    %1070 = vadd.xlane.f32.xlu0 %v1069
    %v1071 = vpop.xlane.xlu0 %1070
    %v1072 = vadd.f32 %v381, %v382
    %1073 = vadd.xlane.f32.xlu0 %v1072
    %v1074 = vpop.xlane.xlu0 %1073
    %v1075 = vadd.f32 %v383, %v384
    %1076 = vadd.xlane.f32.xlu0 %v1075
    %v1077 = vpop.xlane.xlu0 %1076
    %v1078 = vadd.f32 %v385, %v386
    %1079 = vadd.xlane.f32.xlu0 %v1078
    %v1080 = vpop.xlane.xlu0 %1079
    %v1081 = vadd.f32 %v387, %v388
    %1082 = vadd.xlane.f32.xlu0 %v1081
    %v1083 = vpop.xlane.xlu0 %1082
    %v1084 = vadd.f32 %v389, %v390
    %1085 = vadd.xlane.f32.xlu0 %v1084
    %v1086 = vpop.xlane.xlu0 %1085
    %v1087 = vadd.f32 %v391, %v392
    %1088 = vadd.xlane.f32.xlu0 %v1087
    %v1089 = vpop.xlane.xlu0 %1088
    %v1090 = vadd.f32 %v393, %v394
    %1091 = vadd.xlane.f32.xlu0 %v1090
    %v1092 = vpop.xlane.xlu0 %1091
    %v1093 = vadd.f32 %v395, %v396
    %1094 = vadd.xlane.f32.xlu0 %v1093
    %v1095 = vpop.xlane.xlu0 %1094
    %v1096 = vadd.f32 %v397, %v398
    %1097 = vadd.xlane.f32.xlu0 %v1096
    %v1098 = vpop.xlane.xlu0 %1097
    %v1099 = vadd.f32 %v399, %v400
    %1100 = vadd.xlane.f32.xlu0 %v1099
    %v1101 = vpop.xlane.xlu0 %1100
    %v1102 = vadd.f32 %v401, %v402
    %1103 = vadd.xlane.f32.xlu0 %v1102
    %v1104 = vpop.xlane.xlu0 %1103
    %v1105 = vadd.f32 %v403, %v404
    %1106 = vadd.xlane.f32.xlu0 %v1105
    %v1107 = vpop.xlane.xlu0 %1106
    %v1108 = vadd.f32 %v405, %v406
    %1109 = vadd.xlane.f32.xlu0 %v1108
    %v1110 = vpop.xlane.xlu0 %1109
    %v1111 = vadd.f32 %v407, %v408
    %1112 = vadd.xlane.f32.xlu0 %v1111
    %v1113 = vpop.xlane.xlu0 %1112
    %v1114 = vadd.f32 %v409, %v410
    %1115 = vadd.xlane.f32.xlu0 %v1114
    %v1116 = vpop.xlane.xlu0 %1115
    %v1117 = vadd.f32 %v411, %v412
    %1118 = vadd.xlane.f32.xlu0 %v1117
    %v1119 = vpop.xlane.xlu0 %1118
    %v1120 = vadd.f32 %v413, %v414
    %1121 = vadd.xlane.f32.xlu0 %v1120
    %v1122 = vpop.xlane.xlu0 %1121
    %v1123 = vadd.f32 %v415, %v416
    %1124 = vadd.xlane.f32.xlu0 %v1123
    %v1125 = vpop.xlane.xlu0 %1124
    %v1126 = vadd.f32 %v417, %v418
    %1127 = vadd.xlane.f32.xlu0 %v1126
    %v1128 = vpop.xlane.xlu0 %1127
    %v1129 = vadd.f32 %v419, %v420
    %1130 = vadd.xlane.f32.xlu0 %v1129
    %v1131 = vpop.xlane.xlu0 %1130
    %v1132 = vadd.f32 %v421, %v422
    %1133 = vadd.xlane.f32.xlu0 %v1132
    %v1134 = vpop.xlane.xlu0 %1133
    %v1135 = vadd.f32 %v423, %v424
    %1136 = vadd.xlane.f32.xlu0 %v1135
    %v1137 = vpop.xlane.xlu0 %1136
    %v1138 = vadd.f32 %v425, %v426
    %1139 = vadd.xlane.f32.xlu0 %v1138
    %v1140 = vpop.xlane.xlu0 %1139
    %v1141 = vadd.f32 %v427, %v428
    %1142 = vadd.xlane.f32.xlu0 %v1141
    %v1143 = vpop.xlane.xlu0 %1142
    %v1144 = vadd.f32 %v429, %v430
    %1145 = vadd.xlane.f32.xlu0 %v1144
    %v1146 = vpop.xlane.xlu0 %1145
    %v1147 = vadd.f32 %v431, %v432
    %1148 = vadd.xlane.f32.xlu0 %v1147
    %v1149 = vpop.xlane.xlu0 %1148
    %v1150 = vadd.f32 %v433, %v434
    %1151 = vadd.xlane.f32.xlu0 %v1150
    %v1152 = vpop.xlane.xlu0 %1151
    %v1153 = vadd.f32 %v435, %v436
    %1154 = vadd.xlane.f32.xlu0 %v1153
    %v1155 = vpop.xlane.xlu0 %1154
    %v1156 = vadd.f32 %v437, %v438
    %1157 = vadd.xlane.f32.xlu0 %v1156
    %v1158 = vpop.xlane.xlu0 %1157
    %v1159 = vadd.f32 %v439, %v440
    %1160 = vadd.xlane.f32.xlu0 %v1159
    %v1161 = vpop.xlane.xlu0 %1160
    %v1162 = vadd.f32 %v441, %v442
    %1163 = vadd.xlane.f32.xlu0 %v1162
    %v1164 = vpop.xlane.xlu0 %1163
    %v1165 = vadd.f32 %v443, %v444
    %1166 = vadd.xlane.f32.xlu0 %v1165
    %v1167 = vpop.xlane.xlu0 %1166
    %v1168 = vadd.f32 %v445, %v446
    %1169 = vadd.xlane.f32.xlu0 %v1168
    %v1170 = vpop.xlane.xlu0 %1169
    %v1171 = vadd.f32 %v447, %v448
    %1172 = vadd.xlane.f32.xlu0 %v1171
    %v1173 = vpop.xlane.xlu0 %1172
    %v1174 = vadd.f32 %v449, %v450
    %1175 = vadd.xlane.f32.xlu0 %v1174
    %v1176 = vpop.xlane.xlu0 %1175
    %v1177 = vadd.f32 %v451, %v452
    %1178 = vadd.xlane.f32.xlu0 %v1177
    %v1179 = vpop.xlane.xlu0 %1178
    %v1180 = vadd.f32 %v453, %v454
    %1181 = vadd.xlane.f32.xlu0 %v1180
    %v1182 = vpop.xlane.xlu0 %1181
    %v1183 = vadd.f32 %v455, %v456
    %1184 = vadd.xlane.f32.xlu0 %v1183
    %v1185 = vpop.xlane.xlu0 %1184
    %v1186 = vadd.f32 %v457, %v458
    %1187 = vadd.xlane.f32.xlu0 %v1186
    %v1188 = vpop.xlane.xlu0 %1187
    %v1189 = vadd.f32 %v459, %v460
    %1190 = vadd.xlane.f32.xlu0 %v1189
    %v1191 = vpop.xlane.xlu0 %1190
    %v1192 = vadd.f32 %v461, %v462
    %1193 = vadd.xlane.f32.xlu0 %v1192
    %v1194 = vpop.xlane.xlu0 %1193
    %v1195 = vadd.f32 %v463, %v464
    %1196 = vadd.xlane.f32.xlu0 %v1195
    %v1197 = vpop.xlane.xlu0 %1196
    %v1198 = vadd.f32 %v465, %v466
    %1199 = vadd.xlane.f32.xlu0 %v1198
    %v1200 = vpop.xlane.xlu0 %1199
    %v1201 = vadd.f32 %v467, %v468
    %1202 = vadd.xlane.f32.xlu0 %v1201
    %v1203 = vpop.xlane.xlu0 %1202
    %v1204 = vadd.f32 %v469, %v470
    %1205 = vadd.xlane.f32.xlu0 %v1204
    %v1206 = vpop.xlane.xlu0 %1205
    %v1207 = vadd.f32 %v471, %v472
    %1208 = vadd.xlane.f32.xlu0 %v1207
    %v1209 = vpop.xlane.xlu0 %1208
    %v1210 = vadd.f32 %v473, %v474
    %1211 = vadd.xlane.f32.xlu0 %v1210
    %v1212 = vpop.xlane.xlu0 %1211
    %v1213 = vadd.f32 %v475, %v476
    %1214 = vadd.xlane.f32.xlu0 %v1213
    %v1215 = vpop.xlane.xlu0 %1214
    %v1216 = vadd.f32 %v477, %v478
    %1217 = vadd.xlane.f32.xlu0 %v1216
    %v1218 = vpop.xlane.xlu0 %1217
    %v1219 = vadd.f32 %v479, %v480
    %1220 = vadd.xlane.f32.xlu0 %v1219
    %v1221 = vpop.xlane.xlu0 %1220
    %v1222 = vadd.f32 %v481, %v482
    %1223 = vadd.xlane.f32.xlu0 %v1222
    %v1224 = vpop.xlane.xlu0 %1223
    %v1225 = vadd.f32 %v483, %v484
    %1226 = vadd.xlane.f32.xlu0 %v1225
    %v1227 = vpop.xlane.xlu0 %1226
    %v1228 = vadd.f32 %v485, %v486
    %1229 = vadd.xlane.f32.xlu0 %v1228
    %v1230 = vpop.xlane.xlu0 %1229
    %v1231 = vadd.f32 %v487, %v488
    %1232 = vadd.xlane.f32.xlu0 %v1231
    %v1233 = vpop.xlane.xlu0 %1232
    %v1234 = vadd.f32 %v489, %v490
    %1235 = vadd.xlane.f32.xlu0 %v1234
    %v1236 = vpop.xlane.xlu0 %1235
    %v1237 = vadd.f32 %v491, %v492
    %1238 = vadd.xlane.f32.xlu0 %v1237
    %v1239 = vpop.xlane.xlu0 %1238
    %v1240 = vadd.f32 %v493, %v494
    %1241 = vadd.xlane.f32.xlu0 %v1240
    %v1242 = vpop.xlane.xlu0 %1241
    %v1243 = vadd.f32 %v495, %v496
    %1244 = vadd.xlane.f32.xlu0 %v1243
    %v1245 = vpop.xlane.xlu0 %1244
    %v1246 = vadd.f32 %v497, %v498
    %1247 = vadd.xlane.f32.xlu0 %v1246
    %v1248 = vpop.xlane.xlu0 %1247
    %v1249 = vadd.f32 %v499, %v500
    %1250 = vadd.xlane.f32.xlu0 %v1249
    %v1251 = vpop.xlane.xlu0 %1250
    %v1252 = vadd.f32 %v501, %v502
    %1253 = vadd.xlane.f32.xlu0 %v1252
    %v1254 = vpop.xlane.xlu0 %1253
    %v1255 = vadd.f32 %v503, %v504
    %1256 = vadd.xlane.f32.xlu0 %v1255
    %v1257 = vpop.xlane.xlu0 %1256
    %v1258 = vadd.f32 %v505, %v506
    %1259 = vadd.xlane.f32.xlu0 %v1258
    %v1260 = vpop.xlane.xlu0 %1259
    %v1261 = vadd.f32 %v507, %v508
    %1262 = vadd.xlane.f32.xlu0 %v1261
    %v1263 = vpop.xlane.xlu0 %1262
    %v1264 = vadd.f32 %v509, %v510
    %1265 = vadd.xlane.f32.xlu0 %v1264
    %v1266 = vpop.xlane.xlu0 %1265
    %v1267 = vadd.f32 %v511, %v512
    %1268 = vadd.xlane.f32.xlu0 %v1267
    %v1269 = vpop.xlane.xlu0 %1268
    %v1270 = vadd.f32 %v513, %v514
    %1271 = vadd.xlane.f32.xlu0 %v1270
    %v1272 = vpop.xlane.xlu0 %1271
    %v1273 = vadd.f32 %v515, %v516
    %1274 = vadd.xlane.f32.xlu0 %v1273
    %v1275 = vpop.xlane.xlu0 %1274
    %v1276 = vadd.f32 %v517, %v518
    %1277 = vadd.xlane.f32.xlu0 %v1276
    %v1278 = vpop.xlane.xlu0 %1277
    %v1279 = vadd.f32 %v519, %v520
    %1280 = vadd.xlane.f32.xlu0 %v1279
    %v1281 = vpop.xlane.xlu0 %1280
    %v1282 = vadd.f32 %v521, %v522
    %1283 = vadd.xlane.f32.xlu0 %v1282
    %v1284 = vpop.xlane.xlu0 %1283
    %v1285 = vadd.f32 %v523, %v524
    %1286 = vadd.xlane.f32.xlu0 %v1285
    %v1287 = vpop.xlane.xlu0 %1286
    %v1288 = vadd.f32 %v525, %v526
    %1289 = vadd.xlane.f32.xlu0 %v1288
    %v1290 = vpop.xlane.xlu0 %1289
    %v1291 = vadd.f32 %v527, %v528
    %1292 = vadd.xlane.f32.xlu0 %v1291
    %v1293 = vpop.xlane.xlu0 %1292
    %v1294 = vadd.f32 %v529, %v530
    %1295 = vadd.xlane.f32.xlu0 %v1294
    %v1296 = vpop.xlane.xlu0 %1295
    %v1297 = vadd.f32 %v531, %v532
    %1298 = vadd.xlane.f32.xlu0 %v1297
    %v1299 = vpop.xlane.xlu0 %1298
    %v1300 = vadd.f32 %v533, %v534
    %1301 = vadd.xlane.f32.xlu0 %v1300
    %v1302 = vpop.xlane.xlu0 %1301
    %v1303 = vmul.f32 %v537, 0.00390625
    %v1304 = vmul.f32 %v540, 0.00390625
    %v1305 = vmul.f32 %v543, 0.00390625
    %v1306 = vmul.f32 %v546, 0.00390625
    %v1307 = vmul.f32 %v549, 0.00390625
    %v1308 = vmul.f32 %v552, 0.00390625
    %v1309 = vmul.f32 %v555, 0.00390625
    %v1310 = vmul.f32 %v558, 0.00390625
    %v1311 = vmul.f32 %v561, 0.00390625
    %v1312 = vmul.f32 %v564, 0.00390625
    %v1313 = vmul.f32 %v567, 0.00390625
    %v1314 = vmul.f32 %v570, 0.00390625
    %v1315 = vmul.f32 %v573, 0.00390625
    %v1316 = vmul.f32 %v576, 0.00390625
    %v1317 = vmul.f32 %v579, 0.00390625
    %v1318 = vmul.f32 %v582, 0.00390625
    %v1319 = vmul.f32 %v585, 0.00390625
    %v1320 = vmul.f32 %v588, 0.00390625
    %v1321 = vmul.f32 %v591, 0.00390625
    %v1322 = vmul.f32 %v594, 0.00390625
    %v1323 = vmul.f32 %v597, 0.00390625
    %v1324 = vmul.f32 %v600, 0.00390625
    %v1325 = vmul.f32 %v603, 0.00390625
    %v1326 = vmul.f32 %v606, 0.00390625
    %v1327 = vmul.f32 %v609, 0.00390625
    %v1328 = vmul.f32 %v612, 0.00390625
    %v1329 = vmul.f32 %v615, 0.00390625
    %v1330 = vmul.f32 %v618, 0.00390625
    %v1331 = vmul.f32 %v621, 0.00390625
    %v1332 = vmul.f32 %v624, 0.00390625
    %v1333 = vmul.f32 %v627, 0.00390625
    %v1334 = vmul.f32 %v630, 0.00390625
    %v1335 = vmul.f32 %v633, 0.00390625
    %v1336 = vmul.f32 %v636, 0.00390625
    %v1337 = vmul.f32 %v639, 0.00390625
    %v1338 = vmul.f32 %v642, 0.00390625
    %v1339 = vmul.f32 %v645, 0.00390625
    %v1340 = vmul.f32 %v648, 0.00390625
    %v1341 = vmul.f32 %v651, 0.00390625
    %v1342 = vmul.f32 %v654, 0.00390625
    %v1343 = vmul.f32 %v657, 0.00390625
    %v1344 = vmul.f32 %v660, 0.00390625
    %v1345 = vmul.f32 %v663, 0.00390625
    %v1346 = vmul.f32 %v666, 0.00390625
    %v1347 = vmul.f32 %v669, 0.00390625
    %v1348 = vmul.f32 %v672, 0.00390625
    %v1349 = vmul.f32 %v675, 0.00390625
    %v1350 = vmul.f32 %v678, 0.00390625
    %v1351 = vmul.f32 %v681, 0.00390625
    %v1352 = vmul.f32 %v684, 0.00390625
    %v1353 = vmul.f32 %v687, 0.00390625
    %v1354 = vmul.f32 %v690, 0.00390625
    %v1355 = vmul.f32 %v693, 0.00390625
    %v1356 = vmul.f32 %v696, 0.00390625
    %v1357 = vmul.f32 %v699, 0.00390625
    %v1358 = vmul.f32 %v702, 0.00390625
    %v1359 = vmul.f32 %v705, 0.00390625
    %v1360 = vmul.f32 %v708, 0.00390625
    %v1361 = vmul.f32 %v711, 0.00390625
    %v1362 = vmul.f32 %v714, 0.00390625
    %v1363 = vmul.f32 %v717, 0.00390625
    %v1364 = vmul.f32 %v720, 0.00390625
    %v1365 = vmul.f32 %v723, 0.00390625
    %v1366 = vmul.f32 %v726, 0.00390625
    %v1367 = vmul.f32 %v729, 0.00390625
    %v1368 = vmul.f32 %v732, 0.00390625
    %v1369 = vmul.f32 %v735, 0.00390625
    %v1370 = vmul.f32 %v738, 0.00390625
    %v1371 = vmul.f32 %v741, 0.00390625
    %v1372 = vmul.f32 %v744, 0.00390625
    %v1373 = vmul.f32 %v747, 0.00390625
    %v1374 = vmul.f32 %v750, 0.00390625
    %v1375 = vmul.f32 %v753, 0.00390625
    %v1376 = vmul.f32 %v756, 0.00390625
    %v1377 = vmul.f32 %v759, 0.00390625
    %v1378 = vmul.f32 %v762, 0.00390625
    %v1379 = vmul.f32 %v765, 0.00390625
    %v1380 = vmul.f32 %v768, 0.00390625
    %v1381 = vmul.f32 %v771, 0.00390625
    %v1382 = vmul.f32 %v774, 0.00390625
    %v1383 = vmul.f32 %v777, 0.00390625
    %v1384 = vmul.f32 %v780, 0.00390625
    %v1385 = vmul.f32 %v783, 0.00390625
    %v1386 = vmul.f32 %v786, 0.00390625
    %v1387 = vmul.f32 %v789, 0.00390625
    %v1388 = vmul.f32 %v792, 0.00390625
    %v1389 = vmul.f32 %v795, 0.00390625
    %v1390 = vmul.f32 %v798, 0.00390625
    %v1391 = vmul.f32 %v801, 0.00390625
    %v1392 = vmul.f32 %v804, 0.00390625
    %v1393 = vmul.f32 %v807, 0.00390625
    %v1394 = vmul.f32 %v810, 0.00390625
    %v1395 = vmul.f32 %v813, 0.00390625
    %v1396 = vmul.f32 %v816, 0.00390625
    %v1397 = vmul.f32 %v819, 0.00390625
    %v1398 = vmul.f32 %v822, 0.00390625
    %v1399 = vmul.f32 %v825, 0.00390625
    %v1400 = vmul.f32 %v828, 0.00390625
    %v1401 = vmul.f32 %v831, 0.00390625
    %v1402 = vmul.f32 %v834, 0.00390625
    %v1403 = vmul.f32 %v837, 0.00390625
    %v1404 = vmul.f32 %v840, 0.00390625
    %v1405 = vmul.f32 %v843, 0.00390625
    %v1406 = vmul.f32 %v846, 0.00390625
    %v1407 = vmul.f32 %v849, 0.00390625
    %v1408 = vmul.f32 %v852, 0.00390625
    %v1409 = vmul.f32 %v855, 0.00390625
    %v1410 = vmul.f32 %v858, 0.00390625
    %v1411 = vmul.f32 %v861, 0.00390625
    %v1412 = vmul.f32 %v864, 0.00390625
    %v1413 = vmul.f32 %v867, 0.00390625
    %v1414 = vmul.f32 %v870, 0.00390625
    %v1415 = vmul.f32 %v873, 0.00390625
    %v1416 = vmul.f32 %v876, 0.00390625
    %v1417 = vmul.f32 %v879, 0.00390625
    %v1418 = vmul.f32 %v882, 0.00390625
    %v1419 = vmul.f32 %v885, 0.00390625
    %v1420 = vmul.f32 %v888, 0.00390625
    %v1421 = vmul.f32 %v891, 0.00390625
    %v1422 = vmul.f32 %v894, 0.00390625
    %v1423 = vmul.f32 %v897, 0.00390625
    %v1424 = vmul.f32 %v900, 0.00390625
    %v1425 = vmul.f32 %v903, 0.00390625
    %v1426 = vmul.f32 %v906, 0.00390625
    %v1427 = vmul.f32 %v909, 0.00390625
    %v1428 = vmul.f32 %v912, 0.00390625
    %v1429 = vmul.f32 %v915, 0.00390625
    %v1430 = vmul.f32 %v918, 0.00390625
    %v1431 = vmul.f32 %v921, 0.00390625
    %v1432 = vmul.f32 %v924, 0.00390625
    %v1433 = vmul.f32 %v927, 0.00390625
    %v1434 = vmul.f32 %v930, 0.00390625
    %v1435 = vmul.f32 %v933, 0.00390625
    %v1436 = vmul.f32 %v936, 0.00390625
    %v1437 = vmul.f32 %v939, 0.00390625
    %v1438 = vmul.f32 %v942, 0.00390625
    %v1439 = vmul.f32 %v945, 0.00390625
    %v1440 = vmul.f32 %v948, 0.00390625
    %v1441 = vmul.f32 %v951, 0.00390625
    %v1442 = vmul.f32 %v954, 0.00390625
    %v1443 = vmul.f32 %v957, 0.00390625
    %v1444 = vmul.f32 %v960, 0.00390625
    %v1445 = vmul.f32 %v963, 0.00390625
    %v1446 = vmul.f32 %v966, 0.00390625
    %v1447 = vmul.f32 %v969, 0.00390625
    %v1448 = vmul.f32 %v972, 0.00390625
    %v1449 = vmul.f32 %v975, 0.00390625
    %v1450 = vmul.f32 %v978, 0.00390625
    %v1451 = vmul.f32 %v981, 0.00390625
    %v1452 = vmul.f32 %v984, 0.00390625
    %v1453 = vmul.f32 %v987, 0.00390625
    %v1454 = vmul.f32 %v990, 0.00390625
    %v1455 = vmul.f32 %v993, 0.00390625
    %v1456 = vmul.f32 %v996, 0.00390625
    %v1457 = vmul.f32 %v999, 0.00390625
    %v1458 = vmul.f32 %v1002, 0.00390625
    %v1459 = vmul.f32 %v1005, 0.00390625
    %v1460 = vmul.f32 %v1008, 0.00390625
    %v1461 = vmul.f32 %v1011, 0.00390625
    %v1462 = vmul.f32 %v1014, 0.00390625
    %v1463 = vmul.f32 %v1017, 0.00390625
    %v1464 = vmul.f32 %v1020, 0.00390625
    %v1465 = vmul.f32 %v1023, 0.00390625
    %v1466 = vmul.f32 %v1026, 0.00390625
    %v1467 = vmul.f32 %v1029, 0.00390625
    %v1468 = vmul.f32 %v1032, 0.00390625
    %v1469 = vmul.f32 %v1035, 0.00390625
    %v1470 = vmul.f32 %v1038, 0.00390625
    %v1471 = vmul.f32 %v1041, 0.00390625
    %v1472 = vmul.f32 %v1044, 0.00390625
    %v1473 = vmul.f32 %v1047, 0.00390625
    %v1474 = vmul.f32 %v1050, 0.00390625
    %v1475 = vmul.f32 %v1053, 0.00390625
    %v1476 = vmul.f32 %v1056, 0.00390625
    %v1477 = vmul.f32 %v1059, 0.00390625
    %v1478 = vmul.f32 %v1062, 0.00390625
    %v1479 = vmul.f32 %v1065, 0.00390625
    %v1480 = vmul.f32 %v1068, 0.00390625
    %v1481 = vmul.f32 %v1071, 0.00390625
    %v1482 = vmul.f32 %v1074, 0.00390625
    %v1483 = vmul.f32 %v1077, 0.00390625
    %v1484 = vmul.f32 %v1080, 0.00390625
    %v1485 = vmul.f32 %v1083, 0.00390625
    %v1486 = vmul.f32 %v1086, 0.00390625
    %v1487 = vmul.f32 %v1089, 0.00390625
    %v1488 = vmul.f32 %v1092, 0.00390625
    %v1489 = vmul.f32 %v1095, 0.00390625
    %v1490 = vmul.f32 %v1098, 0.00390625
    %v1491 = vmul.f32 %v1101, 0.00390625
    %v1492 = vmul.f32 %v1104, 0.00390625
    %v1493 = vmul.f32 %v1107, 0.00390625
    %v1494 = vmul.f32 %v1110, 0.00390625
    %v1495 = vmul.f32 %v1113, 0.00390625
    %v1496 = vmul.f32 %v1116, 0.00390625
    %v1497 = vmul.f32 %v1119, 0.00390625
    %v1498 = vmul.f32 %v1122, 0.00390625
    %v1499 = vmul.f32 %v1125, 0.00390625
    %v1500 = vmul.f32 %v1128, 0.00390625
    %v1501 = vmul.f32 %v1131, 0.00390625
    %v1502 = vmul.f32 %v1134, 0.00390625
    %v1503 = vmul.f32 %v1137, 0.00390625
    %v1504 = vmul.f32 %v1140, 0.00390625
    %v1505 = vmul.f32 %v1143, 0.00390625
    %v1506 = vmul.f32 %v1146, 0.00390625
    %v1507 = vmul.f32 %v1149, 0.00390625
    %v1508 = vmul.f32 %v1152, 0.00390625
    %v1509 = vmul.f32 %v1155, 0.00390625
    %v1510 = vmul.f32 %v1158, 0.00390625
    %v1511 = vmul.f32 %v1161, 0.00390625
    %v1512 = vmul.f32 %v1164, 0.00390625
    %v1513 = vmul.f32 %v1167, 0.00390625
    %v1514 = vmul.f32 %v1170, 0.00390625
    %v1515 = vmul.f32 %v1173, 0.00390625
    %v1516 = vmul.f32 %v1176, 0.00390625
    %v1517 = vmul.f32 %v1179, 0.00390625
    %v1518 = vmul.f32 %v1182, 0.00390625
    %v1519 = vmul.f32 %v1185, 0.00390625
    %v1520 = vmul.f32 %v1188, 0.00390625
    %v1521 = vmul.f32 %v1191, 0.00390625
    %v1522 = vmul.f32 %v1194, 0.00390625
    %v1523 = vmul.f32 %v1197, 0.00390625
    %v1524 = vmul.f32 %v1200, 0.00390625
    %v1525 = vmul.f32 %v1203, 0.00390625
    %v1526 = vmul.f32 %v1206, 0.00390625
    %v1527 = vmul.f32 %v1209, 0.00390625
    %v1528 = vmul.f32 %v1212, 0.00390625
    %v1529 = vmul.f32 %v1215, 0.00390625
    %v1530 = vmul.f32 %v1218, 0.00390625
    %v1531 = vmul.f32 %v1221, 0.00390625
    %v1532 = vmul.f32 %v1224, 0.00390625
    %v1533 = vmul.f32 %v1227, 0.00390625
    %v1534 = vmul.f32 %v1230, 0.00390625
    %v1535 = vmul.f32 %v1233, 0.00390625
    %v1536 = vmul.f32 %v1236, 0.00390625
    %v1537 = vmul.f32 %v1239, 0.00390625
    %v1538 = vmul.f32 %v1242, 0.00390625
    %v1539 = vmul.f32 %v1245, 0.00390625
    %v1540 = vmul.f32 %v1248, 0.00390625
    %v1541 = vmul.f32 %v1251, 0.00390625
    %v1542 = vmul.f32 %v1254, 0.00390625
    %v1543 = vmul.f32 %v1257, 0.00390625
    %v1544 = vmul.f32 %v1260, 0.00390625
    %v1545 = vmul.f32 %v1263, 0.00390625
    %v1546 = vmul.f32 %v1266, 0.00390625
    %v1547 = vmul.f32 %v1269, 0.00390625
    %v1548 = vmul.f32 %v1272, 0.00390625
    %v1549 = vmul.f32 %v1275, 0.00390625
    %v1550 = vmul.f32 %v1278, 0.00390625
    %v1551 = vmul.f32 %v1281, 0.00390625
    %v1552 = vmul.f32 %v1284, 0.00390625
    %v1553 = vmul.f32 %v1287, 0.00390625
    %v1554 = vmul.f32 %v1290, 0.00390625
    %v1555 = vmul.f32 %v1293, 0.00390625
    %v1556 = vmul.f32 %v1296, 0.00390625
    %v1557 = vmul.f32 %v1299, 0.00390625
    %v1558 = vmul.f32 %v1302, 0.00390625
    %v1815 = vlaneseq
    %v1816 = vand.u32 %v1815, 127
    %v1817 = vlaneseq
    %v1818 = vshrl.u32 %v1817, 7
    %v1819 = vsub.s32 %v1816, %v1818
    %v1820 = vrot.slane %v1303, %v1819
    %v1821 = vadd.s32 %v1816, 4294967288
    %v1822 = vlaneseq
    %v1823 = vshrl.u32 %v1822, 7
    %v1824 = vsub.s32 %v1821, %v1823
    %v1825 = vrot.slane %v1304, %v1824
    %vm1826 = vcmask 130112
    %v1827 = vsel %vm1826, %v1825, %v1820
    %v1828 = vadd.s32 %v1816, 4294967280
    %v1829 = vlaneseq
    %v1830 = vshrl.u32 %v1829, 7
    %v1831 = vsub.s32 %v1828, %v1830
    %v1832 = vrot.slane %v1305, %v1831
    %vm1833 = vcmask 195712
    %v1834 = vsel %vm1833, %v1832, %v1827
    %v1835 = vadd.s32 %v1816, 4294967272
    %v1836 = vlaneseq
    %v1837 = vshrl.u32 %v1836, 7
    %v1838 = vsub.s32 %v1835, %v1837
    %v1839 = vrot.slane %v1306, %v1838
    %vm1840 = vcmask 261312
    %v1841 = vsel %vm1840, %v1839, %v1834
    %v1842 = vadd.s32 %v1816, 4294967264
    %v1843 = vlaneseq
    %v1844 = vshrl.u32 %v1843, 7
    %v1845 = vsub.s32 %v1842, %v1844
    %v1846 = vrot.slane %v1307, %v1845
    %vm1847 = vcmask 326912
    %v1848 = vsel %vm1847, %v1846, %v1841
    %v1849 = vadd.s32 %v1816, 4294967256
    %v1850 = vlaneseq
    %v1851 = vshrl.u32 %v1850, 7
    %v1852 = vsub.s32 %v1849, %v1851
    %v1853 = vrot.slane %v1308, %v1852
    %vm1854 = vcmask 392512
    %v1855 = vsel %vm1854, %v1853, %v1848
    %v1856 = vadd.s32 %v1816, 4294967248
    %v1857 = vlaneseq
    %v1858 = vshrl.u32 %v1857, 7
    %v1859 = vsub.s32 %v1856, %v1858
    %v1860 = vrot.slane %v1309, %v1859
    %vm1861 = vcmask 458112
    %v1862 = vsel %vm1861, %v1860, %v1855
    %v1863 = vadd.s32 %v1816, 4294967240
    %v1864 = vlaneseq
    %v1865 = vshrl.u32 %v1864, 7
    %v1866 = vsub.s32 %v1863, %v1865
    %v1867 = vrot.slane %v1310, %v1866
    %vm1868 = vcmask 523712
    %v1869 = vsel %vm1868, %v1867, %v1862
    %v1870 = vadd.s32 %v1816, 4294967232
    %v1871 = vlaneseq
    %v1872 = vshrl.u32 %v1871, 7
    %v1873 = vsub.s32 %v1870, %v1872
    %v1874 = vrot.slane %v1311, %v1873
    %vm1875 = vcmask 589312
    %v1876 = vsel %vm1875, %v1874, %v1869
    %v1877 = vadd.s32 %v1816, 4294967224
    %v1878 = vlaneseq
    %v1879 = vshrl.u32 %v1878, 7
    %v1880 = vsub.s32 %v1877, %v1879
    %v1881 = vrot.slane %v1312, %v1880
    %vm1882 = vcmask 654912
    %v1883 = vsel %vm1882, %v1881, %v1876
    %v1884 = vadd.s32 %v1816, 4294967216
    %v1885 = vlaneseq
    %v1886 = vshrl.u32 %v1885, 7
    %v1887 = vsub.s32 %v1884, %v1886
    %v1888 = vrot.slane %v1313, %v1887
    %vm1889 = vcmask 720512
    %v1890 = vsel %vm1889, %v1888, %v1883
    %v1891 = vadd.s32 %v1816, 4294967208
    %v1892 = vlaneseq
    %v1893 = vshrl.u32 %v1892, 7
    %v1894 = vsub.s32 %v1891, %v1893
    %v1895 = vrot.slane %v1314, %v1894
    %vm1896 = vcmask 786112
    %v1897 = vsel %vm1896, %v1895, %v1890
    %v1898 = vadd.s32 %v1816, 4294967200
    %v1899 = vlaneseq
    %v1900 = vshrl.u32 %v1899, 7
    %v1901 = vsub.s32 %v1898, %v1900
    %v1902 = vrot.slane %v1315, %v1901
    %vm1903 = vcmask 851712
    %v1904 = vsel %vm1903, %v1902, %v1897
    %v1905 = vadd.s32 %v1816, 4294967192
    %v1906 = vlaneseq
    %v1907 = vshrl.u32 %v1906, 7
    %v1908 = vsub.s32 %v1905, %v1907
    %v1909 = vrot.slane %v1316, %v1908
    %vm1910 = vcmask 917312
    %v1911 = vsel %vm1910, %v1909, %v1904
    %v1912 = vadd.s32 %v1816, 4294967184
    %v1913 = vlaneseq
    %v1914 = vshrl.u32 %v1913, 7
    %v1915 = vsub.s32 %v1912, %v1914
    %v1916 = vrot.slane %v1317, %v1915
    %vm1917 = vcmask 982912
    %v1918 = vsel %vm1917, %v1916, %v1911
    %v1919 = vadd.s32 %v1816, 4294967176
    %v1920 = vlaneseq
    %v1921 = vshrl.u32 %v1920, 7
    %v1922 = vsub.s32 %v1919, %v1921
    %v1923 = vrot.slane %v1318, %v1922
    %vm1924 = vcmask 1048512
    %v1925 = vsel %vm1924, %v1923, %v1918
    %v1926 = vlaneseq
    %v1927 = vshrl.u32 %v1926, 7
    %v1928 = vsub.s32 %v1816, %v1927
    %v1929 = vrot.slane %v1319, %v1928
    %v1930 = vlaneseq
    %v1931 = vshrl.u32 %v1930, 7
    %v1932 = vsub.s32 %v1821, %v1931
    %v1933 = vrot.slane %v1320, %v1932
    %v1934 = vsel %vm1826, %v1933, %v1929
    %v1935 = vlaneseq
    %v1936 = vshrl.u32 %v1935, 7
    %v1937 = vsub.s32 %v1828, %v1936
    %v1938 = vrot.slane %v1321, %v1937
    %v1939 = vsel %vm1833, %v1938, %v1934
    %v1940 = vlaneseq
    %v1941 = vshrl.u32 %v1940, 7
    %v1942 = vsub.s32 %v1835, %v1941
    %v1943 = vrot.slane %v1322, %v1942
    %v1944 = vsel %vm1840, %v1943, %v1939
    %v1945 = vlaneseq
    %v1946 = vshrl.u32 %v1945, 7
    %v1947 = vsub.s32 %v1842, %v1946
    %v1948 = vrot.slane %v1323, %v1947
    %v1949 = vsel %vm1847, %v1948, %v1944
    %v1950 = vlaneseq
    %v1951 = vshrl.u32 %v1950, 7
    %v1952 = vsub.s32 %v1849, %v1951
    %v1953 = vrot.slane %v1324, %v1952
    %v1954 = vsel %vm1854, %v1953, %v1949
    %v1955 = vlaneseq
    %v1956 = vshrl.u32 %v1955, 7
    %v1957 = vsub.s32 %v1856, %v1956
    %v1958 = vrot.slane %v1325, %v1957
    %v1959 = vsel %vm1861, %v1958, %v1954
    %v1960 = vlaneseq
    %v1961 = vshrl.u32 %v1960, 7
    %v1962 = vsub.s32 %v1863, %v1961
    %v1963 = vrot.slane %v1326, %v1962
    %v1964 = vsel %vm1868, %v1963, %v1959
    %v1965 = vlaneseq
    %v1966 = vshrl.u32 %v1965, 7
    %v1967 = vsub.s32 %v1870, %v1966
    %v1968 = vrot.slane %v1327, %v1967
    %v1969 = vsel %vm1875, %v1968, %v1964
    %v1970 = vlaneseq
    %v1971 = vshrl.u32 %v1970, 7
    %v1972 = vsub.s32 %v1877, %v1971
    %v1973 = vrot.slane %v1328, %v1972
    %v1974 = vsel %vm1882, %v1973, %v1969
    %v1975 = vlaneseq
    %v1976 = vshrl.u32 %v1975, 7
    %v1977 = vsub.s32 %v1884, %v1976
    %v1978 = vrot.slane %v1329, %v1977
    %v1979 = vsel %vm1889, %v1978, %v1974
    %v1980 = vlaneseq
    %v1981 = vshrl.u32 %v1980, 7
    %v1982 = vsub.s32 %v1891, %v1981
    %v1983 = vrot.slane %v1330, %v1982
    %v1984 = vsel %vm1896, %v1983, %v1979
    %v1985 = vlaneseq
    %v1986 = vshrl.u32 %v1985, 7
    %v1987 = vsub.s32 %v1898, %v1986
    %v1988 = vrot.slane %v1331, %v1987
    %v1989 = vsel %vm1903, %v1988, %v1984
    %v1990 = vlaneseq
    %v1991 = vshrl.u32 %v1990, 7
    %v1992 = vsub.s32 %v1905, %v1991
    %v1993 = vrot.slane %v1332, %v1992
    %v1994 = vsel %vm1910, %v1993, %v1989
    %v1995 = vlaneseq
    %v1996 = vshrl.u32 %v1995, 7
    %v1997 = vsub.s32 %v1912, %v1996
    %v1998 = vrot.slane %v1333, %v1997
    %v1999 = vsel %vm1917, %v1998, %v1994
    %v2000 = vlaneseq
    %v2001 = vshrl.u32 %v2000, 7
    %v2002 = vsub.s32 %v1919, %v2001
    %v2003 = vrot.slane %v1334, %v2002
    %v2004 = vsel %vm1924, %v2003, %v1999
    %v2005 = vlaneseq
    %v2006 = vshrl.u32 %v2005, 7
    %v2007 = vsub.s32 %v1816, %v2006
    %v2008 = vrot.slane %v1335, %v2007
    %v2009 = vlaneseq
    %v2010 = vshrl.u32 %v2009, 7
    %v2011 = vsub.s32 %v1821, %v2010
    %v2012 = vrot.slane %v1336, %v2011
    %v2013 = vsel %vm1826, %v2012, %v2008
    %v2014 = vlaneseq
    %v2015 = vshrl.u32 %v2014, 7
    %v2016 = vsub.s32 %v1828, %v2015
    %v2017 = vrot.slane %v1337, %v2016
    %v2018 = vsel %vm1833, %v2017, %v2013
    %v2019 = vlaneseq
    %v2020 = vshrl.u32 %v2019, 7
    %v2021 = vsub.s32 %v1835, %v2020
    %v2022 = vrot.slane %v1338, %v2021
    %v2023 = vsel %vm1840, %v2022, %v2018
    %v2024 = vlaneseq
    %v2025 = vshrl.u32 %v2024, 7
    %v2026 = vsub.s32 %v1842, %v2025
    %v2027 = vrot.slane %v1339, %v2026
    %v2028 = vsel %vm1847, %v2027, %v2023
    %v2029 = vlaneseq
    %v2030 = vshrl.u32 %v2029, 7
    %v2031 = vsub.s32 %v1849, %v2030
    %v2032 = vrot.slane %v1340, %v2031
    %v2033 = vsel %vm1854, %v2032, %v2028
    %v2034 = vlaneseq
    %v2035 = vshrl.u32 %v2034, 7
    %v2036 = vsub.s32 %v1856, %v2035
    %v2037 = vrot.slane %v1341, %v2036
    %v2038 = vsel %vm1861, %v2037, %v2033
    %v2039 = vlaneseq
    %v2040 = vshrl.u32 %v2039, 7
    %v2041 = vsub.s32 %v1863, %v2040
    %v2042 = vrot.slane %v1342, %v2041
    %v2043 = vsel %vm1868, %v2042, %v2038
    %v2044 = vlaneseq
    %v2045 = vshrl.u32 %v2044, 7
    %v2046 = vsub.s32 %v1870, %v2045
    %v2047 = vrot.slane %v1343, %v2046
    %v2048 = vsel %vm1875, %v2047, %v2043
    %v2049 = vlaneseq
    %v2050 = vshrl.u32 %v2049, 7
    %v2051 = vsub.s32 %v1877, %v2050
    %v2052 = vrot.slane %v1344, %v2051
    %v2053 = vsel %vm1882, %v2052, %v2048
    %v2054 = vlaneseq
    %v2055 = vshrl.u32 %v2054, 7
    %v2056 = vsub.s32 %v1884, %v2055
    %v2057 = vrot.slane %v1345, %v2056
    %v2058 = vsel %vm1889, %v2057, %v2053
    %v2059 = vlaneseq
    %v2060 = vshrl.u32 %v2059, 7
    %v2061 = vsub.s32 %v1891, %v2060
    %v2062 = vrot.slane %v1346, %v2061
    %v2063 = vsel %vm1896, %v2062, %v2058
    %v2064 = vlaneseq
    %v2065 = vshrl.u32 %v2064, 7
    %v2066 = vsub.s32 %v1898, %v2065
    %v2067 = vrot.slane %v1347, %v2066
    %v2068 = vsel %vm1903, %v2067, %v2063
    %v2069 = vlaneseq
    %v2070 = vshrl.u32 %v2069, 7
    %v2071 = vsub.s32 %v1905, %v2070
    %v2072 = vrot.slane %v1348, %v2071
    %v2073 = vsel %vm1910, %v2072, %v2068
    %v2074 = vlaneseq
    %v2075 = vshrl.u32 %v2074, 7
    %v2076 = vsub.s32 %v1912, %v2075
    %v2077 = vrot.slane %v1349, %v2076
    %v2078 = vsel %vm1917, %v2077, %v2073
    %v2079 = vlaneseq
    %v2080 = vshrl.u32 %v2079, 7
    %v2081 = vsub.s32 %v1919, %v2080
    %v2082 = vrot.slane %v1350, %v2081
    %v2083 = vsel %vm1924, %v2082, %v2078
    %v2084 = vlaneseq
    %v2085 = vshrl.u32 %v2084, 7
    %v2086 = vsub.s32 %v1816, %v2085
    %v2087 = vrot.slane %v1351, %v2086
    %v2088 = vlaneseq
    %v2089 = vshrl.u32 %v2088, 7
    %v2090 = vsub.s32 %v1821, %v2089
    %v2091 = vrot.slane %v1352, %v2090
    %v2092 = vsel %vm1826, %v2091, %v2087
    %v2093 = vlaneseq
    %v2094 = vshrl.u32 %v2093, 7
    %v2095 = vsub.s32 %v1828, %v2094
    %v2096 = vrot.slane %v1353, %v2095
    %v2097 = vsel %vm1833, %v2096, %v2092
    %v2098 = vlaneseq
    %v2099 = vshrl.u32 %v2098, 7
    %v2100 = vsub.s32 %v1835, %v2099
    %v2101 = vrot.slane %v1354, %v2100
    %v2102 = vsel %vm1840, %v2101, %v2097
    %v2103 = vlaneseq
    %v2104 = vshrl.u32 %v2103, 7
    %v2105 = vsub.s32 %v1842, %v2104
    %v2106 = vrot.slane %v1355, %v2105
    %v2107 = vsel %vm1847, %v2106, %v2102
    %v2108 = vlaneseq
    %v2109 = vshrl.u32 %v2108, 7
    %v2110 = vsub.s32 %v1849, %v2109
    %v2111 = vrot.slane %v1356, %v2110
    %v2112 = vsel %vm1854, %v2111, %v2107
    %v2113 = vlaneseq
    %v2114 = vshrl.u32 %v2113, 7
    %v2115 = vsub.s32 %v1856, %v2114
    %v2116 = vrot.slane %v1357, %v2115
    %v2117 = vsel %vm1861, %v2116, %v2112
    %v2118 = vlaneseq
    %v2119 = vshrl.u32 %v2118, 7
    %v2120 = vsub.s32 %v1863, %v2119
    %v2121 = vrot.slane %v1358, %v2120
    %v2122 = vsel %vm1868, %v2121, %v2117
    %v2123 = vlaneseq
    %v2124 = vshrl.u32 %v2123, 7
    %v2125 = vsub.s32 %v1870, %v2124
    %v2126 = vrot.slane %v1359, %v2125
    %v2127 = vsel %vm1875, %v2126, %v2122
    %v2128 = vlaneseq
    %v2129 = vshrl.u32 %v2128, 7
    %v2130 = vsub.s32 %v1877, %v2129
    %v2131 = vrot.slane %v1360, %v2130
    %v2132 = vsel %vm1882, %v2131, %v2127
    %v2133 = vlaneseq
    %v2134 = vshrl.u32 %v2133, 7
    %v2135 = vsub.s32 %v1884, %v2134
    %v2136 = vrot.slane %v1361, %v2135
    %v2137 = vsel %vm1889, %v2136, %v2132
    %v2138 = vlaneseq
    %v2139 = vshrl.u32 %v2138, 7
    %v2140 = vsub.s32 %v1891, %v2139
    %v2141 = vrot.slane %v1362, %v2140
    %v2142 = vsel %vm1896, %v2141, %v2137
    %v2143 = vlaneseq
    %v2144 = vshrl.u32 %v2143, 7
    %v2145 = vsub.s32 %v1898, %v2144
    %v2146 = vrot.slane %v1363, %v2145
    %v2147 = vsel %vm1903, %v2146, %v2142
    %v2148 = vlaneseq
    %v2149 = vshrl.u32 %v2148, 7
    %v2150 = vsub.s32 %v1905, %v2149
    %v2151 = vrot.slane %v1364, %v2150
    %v2152 = vsel %vm1910, %v2151, %v2147
    %v2153 = vlaneseq
    %v2154 = vshrl.u32 %v2153, 7
    %v2155 = vsub.s32 %v1912, %v2154
    %v2156 = vrot.slane %v1365, %v2155
    %v2157 = vsel %vm1917, %v2156, %v2152
    %v2158 = vlaneseq
    %v2159 = vshrl.u32 %v2158, 7
    %v2160 = vsub.s32 %v1919, %v2159
    %v2161 = vrot.slane %v1366, %v2160
    %v2162 = vsel %vm1924, %v2161, %v2157
    %v2163 = vlaneseq
    %v2164 = vshrl.u32 %v2163, 7
    %v2165 = vsub.s32 %v1816, %v2164
    %v2166 = vrot.slane %v1367, %v2165
    %v2167 = vlaneseq
    %v2168 = vshrl.u32 %v2167, 7
    %v2169 = vsub.s32 %v1821, %v2168
    %v2170 = vrot.slane %v1368, %v2169
    %v2171 = vsel %vm1826, %v2170, %v2166
    %v2172 = vlaneseq
    %v2173 = vshrl.u32 %v2172, 7
    %v2174 = vsub.s32 %v1828, %v2173
    %v2175 = vrot.slane %v1369, %v2174
    %v2176 = vsel %vm1833, %v2175, %v2171
    %v2177 = vlaneseq
    %v2178 = vshrl.u32 %v2177, 7
    %v2179 = vsub.s32 %v1835, %v2178
    %v2180 = vrot.slane %v1370, %v2179
    %v2181 = vsel %vm1840, %v2180, %v2176
    %v2182 = vlaneseq
    %v2183 = vshrl.u32 %v2182, 7
    %v2184 = vsub.s32 %v1842, %v2183
    %v2185 = vrot.slane %v1371, %v2184
    %v2186 = vsel %vm1847, %v2185, %v2181
    %v2187 = vlaneseq
    %v2188 = vshrl.u32 %v2187, 7
    %v2189 = vsub.s32 %v1849, %v2188
    %v2190 = vrot.slane %v1372, %v2189
    %v2191 = vsel %vm1854, %v2190, %v2186
    %v2192 = vlaneseq
    %v2193 = vshrl.u32 %v2192, 7
    %v2194 = vsub.s32 %v1856, %v2193
    %v2195 = vrot.slane %v1373, %v2194
    %v2196 = vsel %vm1861, %v2195, %v2191
    %v2197 = vlaneseq
    %v2198 = vshrl.u32 %v2197, 7
    %v2199 = vsub.s32 %v1863, %v2198
    %v2200 = vrot.slane %v1374, %v2199
    %v2201 = vsel %vm1868, %v2200, %v2196
    %v2202 = vlaneseq
    %v2203 = vshrl.u32 %v2202, 7
    %v2204 = vsub.s32 %v1870, %v2203
    %v2205 = vrot.slane %v1375, %v2204
    %v2206 = vsel %vm1875, %v2205, %v2201
    %v2207 = vlaneseq
    %v2208 = vshrl.u32 %v2207, 7
    %v2209 = vsub.s32 %v1877, %v2208
    %v2210 = vrot.slane %v1376, %v2209
    %v2211 = vsel %vm1882, %v2210, %v2206
    %v2212 = vlaneseq
    %v2213 = vshrl.u32 %v2212, 7
    %v2214 = vsub.s32 %v1884, %v2213
    %v2215 = vrot.slane %v1377, %v2214
    %v2216 = vsel %vm1889, %v2215, %v2211
    %v2217 = vlaneseq
    %v2218 = vshrl.u32 %v2217, 7
    %v2219 = vsub.s32 %v1891, %v2218
    %v2220 = vrot.slane %v1378, %v2219
    %v2221 = vsel %vm1896, %v2220, %v2216
    %v2222 = vlaneseq
    %v2223 = vshrl.u32 %v2222, 7
    %v2224 = vsub.s32 %v1898, %v2223
    %v2225 = vrot.slane %v1379, %v2224
    %v2226 = vsel %vm1903, %v2225, %v2221
    %v2227 = vlaneseq
    %v2228 = vshrl.u32 %v2227, 7
    %v2229 = vsub.s32 %v1905, %v2228
    %v2230 = vrot.slane %v1380, %v2229
    %v2231 = vsel %vm1910, %v2230, %v2226
    %v2232 = vlaneseq
    %v2233 = vshrl.u32 %v2232, 7
    %v2234 = vsub.s32 %v1912, %v2233
    %v2235 = vrot.slane %v1381, %v2234
    %v2236 = vsel %vm1917, %v2235, %v2231
    %v2237 = vlaneseq
    %v2238 = vshrl.u32 %v2237, 7
    %v2239 = vsub.s32 %v1919, %v2238
    %v2240 = vrot.slane %v1382, %v2239
    %v2241 = vsel %vm1924, %v2240, %v2236
    %v2242 = vlaneseq
    %v2243 = vshrl.u32 %v2242, 7
    %v2244 = vsub.s32 %v1816, %v2243
    %v2245 = vrot.slane %v1383, %v2244
    %v2246 = vlaneseq
    %v2247 = vshrl.u32 %v2246, 7
    %v2248 = vsub.s32 %v1821, %v2247
    %v2249 = vrot.slane %v1384, %v2248
    %v2250 = vsel %vm1826, %v2249, %v2245
    %v2251 = vlaneseq
    %v2252 = vshrl.u32 %v2251, 7
    %v2253 = vsub.s32 %v1828, %v2252
    %v2254 = vrot.slane %v1385, %v2253
    %v2255 = vsel %vm1833, %v2254, %v2250
    %v2256 = vlaneseq
    %v2257 = vshrl.u32 %v2256, 7
    %v2258 = vsub.s32 %v1835, %v2257
    %v2259 = vrot.slane %v1386, %v2258
    %v2260 = vsel %vm1840, %v2259, %v2255
    %v2261 = vlaneseq
    %v2262 = vshrl.u32 %v2261, 7
    %v2263 = vsub.s32 %v1842, %v2262
    %v2264 = vrot.slane %v1387, %v2263
    %v2265 = vsel %vm1847, %v2264, %v2260
    %v2266 = vlaneseq
    %v2267 = vshrl.u32 %v2266, 7
    %v2268 = vsub.s32 %v1849, %v2267
    %v2269 = vrot.slane %v1388, %v2268
    %v2270 = vsel %vm1854, %v2269, %v2265
    %v2271 = vlaneseq
    %v2272 = vshrl.u32 %v2271, 7
    %v2273 = vsub.s32 %v1856, %v2272
    %v2274 = vrot.slane %v1389, %v2273
    %v2275 = vsel %vm1861, %v2274, %v2270
    %v2276 = vlaneseq
    %v2277 = vshrl.u32 %v2276, 7
    %v2278 = vsub.s32 %v1863, %v2277
    %v2279 = vrot.slane %v1390, %v2278
    %v2280 = vsel %vm1868, %v2279, %v2275
    %v2281 = vlaneseq
    %v2282 = vshrl.u32 %v2281, 7
    %v2283 = vsub.s32 %v1870, %v2282
    %v2284 = vrot.slane %v1391, %v2283
    %v2285 = vsel %vm1875, %v2284, %v2280
    %v2286 = vlaneseq
    %v2287 = vshrl.u32 %v2286, 7
    %v2288 = vsub.s32 %v1877, %v2287
    %v2289 = vrot.slane %v1392, %v2288
    %v2290 = vsel %vm1882, %v2289, %v2285
    %v2291 = vlaneseq
    %v2292 = vshrl.u32 %v2291, 7
    %v2293 = vsub.s32 %v1884, %v2292
    %v2294 = vrot.slane %v1393, %v2293
    %v2295 = vsel %vm1889, %v2294, %v2290
    %v2296 = vlaneseq
    %v2297 = vshrl.u32 %v2296, 7
    %v2298 = vsub.s32 %v1891, %v2297
    %v2299 = vrot.slane %v1394, %v2298
    %v2300 = vsel %vm1896, %v2299, %v2295
    %v2301 = vlaneseq
    %v2302 = vshrl.u32 %v2301, 7
    %v2303 = vsub.s32 %v1898, %v2302
    %v2304 = vrot.slane %v1395, %v2303
    %v2305 = vsel %vm1903, %v2304, %v2300
    %v2306 = vlaneseq
    %v2307 = vshrl.u32 %v2306, 7
    %v2308 = vsub.s32 %v1905, %v2307
    %v2309 = vrot.slane %v1396, %v2308
    %v2310 = vsel %vm1910, %v2309, %v2305
    %v2311 = vlaneseq
    %v2312 = vshrl.u32 %v2311, 7
    %v2313 = vsub.s32 %v1912, %v2312
    %v2314 = vrot.slane %v1397, %v2313
    %v2315 = vsel %vm1917, %v2314, %v2310
    %v2316 = vlaneseq
    %v2317 = vshrl.u32 %v2316, 7
    %v2318 = vsub.s32 %v1919, %v2317
    %v2319 = vrot.slane %v1398, %v2318
    %v2320 = vsel %vm1924, %v2319, %v2315
    %v2321 = vlaneseq
    %v2322 = vshrl.u32 %v2321, 7
    %v2323 = vsub.s32 %v1816, %v2322
    %v2324 = vrot.slane %v1399, %v2323
    %v2325 = vlaneseq
    %v2326 = vshrl.u32 %v2325, 7
    %v2327 = vsub.s32 %v1821, %v2326
    %v2328 = vrot.slane %v1400, %v2327
    %v2329 = vsel %vm1826, %v2328, %v2324
    %v2330 = vlaneseq
    %v2331 = vshrl.u32 %v2330, 7
    %v2332 = vsub.s32 %v1828, %v2331
    %v2333 = vrot.slane %v1401, %v2332
    %v2334 = vsel %vm1833, %v2333, %v2329
    %v2335 = vlaneseq
    %v2336 = vshrl.u32 %v2335, 7
    %v2337 = vsub.s32 %v1835, %v2336
    %v2338 = vrot.slane %v1402, %v2337
    %v2339 = vsel %vm1840, %v2338, %v2334
    %v2340 = vlaneseq
    %v2341 = vshrl.u32 %v2340, 7
    %v2342 = vsub.s32 %v1842, %v2341
    %v2343 = vrot.slane %v1403, %v2342
    %v2344 = vsel %vm1847, %v2343, %v2339
    %v2345 = vlaneseq
    %v2346 = vshrl.u32 %v2345, 7
    %v2347 = vsub.s32 %v1849, %v2346
    %v2348 = vrot.slane %v1404, %v2347
    %v2349 = vsel %vm1854, %v2348, %v2344
    %v2350 = vlaneseq
    %v2351 = vshrl.u32 %v2350, 7
    %v2352 = vsub.s32 %v1856, %v2351
    %v2353 = vrot.slane %v1405, %v2352
    %v2354 = vsel %vm1861, %v2353, %v2349
    %v2355 = vlaneseq
    %v2356 = vshrl.u32 %v2355, 7
    %v2357 = vsub.s32 %v1863, %v2356
    %v2358 = vrot.slane %v1406, %v2357
    %v2359 = vsel %vm1868, %v2358, %v2354
    %v2360 = vlaneseq
    %v2361 = vshrl.u32 %v2360, 7
    %v2362 = vsub.s32 %v1870, %v2361
    %v2363 = vrot.slane %v1407, %v2362
    %v2364 = vsel %vm1875, %v2363, %v2359
    %v2365 = vlaneseq
    %v2366 = vshrl.u32 %v2365, 7
    %v2367 = vsub.s32 %v1877, %v2366
    %v2368 = vrot.slane %v1408, %v2367
    %v2369 = vsel %vm1882, %v2368, %v2364
    %v2370 = vlaneseq
    %v2371 = vshrl.u32 %v2370, 7
    %v2372 = vsub.s32 %v1884, %v2371
    %v2373 = vrot.slane %v1409, %v2372
    %v2374 = vsel %vm1889, %v2373, %v2369
    %v2375 = vlaneseq
    %v2376 = vshrl.u32 %v2375, 7
    %v2377 = vsub.s32 %v1891, %v2376
    %v2378 = vrot.slane %v1410, %v2377
    %v2379 = vsel %vm1896, %v2378, %v2374
    %v2380 = vlaneseq
    %v2381 = vshrl.u32 %v2380, 7
    %v2382 = vsub.s32 %v1898, %v2381
    %v2383 = vrot.slane %v1411, %v2382
    %v2384 = vsel %vm1903, %v2383, %v2379
    %v2385 = vlaneseq
    %v2386 = vshrl.u32 %v2385, 7
    %v2387 = vsub.s32 %v1905, %v2386
    %v2388 = vrot.slane %v1412, %v2387
    %v2389 = vsel %vm1910, %v2388, %v2384
    %v2390 = vlaneseq
    %v2391 = vshrl.u32 %v2390, 7
    %v2392 = vsub.s32 %v1912, %v2391
    %v2393 = vrot.slane %v1413, %v2392
    %v2394 = vsel %vm1917, %v2393, %v2389
    %v2395 = vlaneseq
    %v2396 = vshrl.u32 %v2395, 7
    %v2397 = vsub.s32 %v1919, %v2396
    %v2398 = vrot.slane %v1414, %v2397
    %v2399 = vsel %vm1924, %v2398, %v2394
    %v2400 = vlaneseq
    %v2401 = vshrl.u32 %v2400, 7
    %v2402 = vsub.s32 %v1816, %v2401
    %v2403 = vrot.slane %v1415, %v2402
    %v2404 = vlaneseq
    %v2405 = vshrl.u32 %v2404, 7
    %v2406 = vsub.s32 %v1821, %v2405
    %v2407 = vrot.slane %v1416, %v2406
    %v2408 = vsel %vm1826, %v2407, %v2403
    %v2409 = vlaneseq
    %v2410 = vshrl.u32 %v2409, 7
    %v2411 = vsub.s32 %v1828, %v2410
    %v2412 = vrot.slane %v1417, %v2411
    %v2413 = vsel %vm1833, %v2412, %v2408
    %v2414 = vlaneseq
    %v2415 = vshrl.u32 %v2414, 7
    %v2416 = vsub.s32 %v1835, %v2415
    %v2417 = vrot.slane %v1418, %v2416
    %v2418 = vsel %vm1840, %v2417, %v2413
    %v2419 = vlaneseq
    %v2420 = vshrl.u32 %v2419, 7
    %v2421 = vsub.s32 %v1842, %v2420
    %v2422 = vrot.slane %v1419, %v2421
    %v2423 = vsel %vm1847, %v2422, %v2418
    %v2424 = vlaneseq
    %v2425 = vshrl.u32 %v2424, 7
    %v2426 = vsub.s32 %v1849, %v2425
    %v2427 = vrot.slane %v1420, %v2426
    %v2428 = vsel %vm1854, %v2427, %v2423
    %v2429 = vlaneseq
    %v2430 = vshrl.u32 %v2429, 7
    %v2431 = vsub.s32 %v1856, %v2430
    %v2432 = vrot.slane %v1421, %v2431
    %v2433 = vsel %vm1861, %v2432, %v2428
    %v2434 = vlaneseq
    %v2435 = vshrl.u32 %v2434, 7
    %v2436 = vsub.s32 %v1863, %v2435
    %v2437 = vrot.slane %v1422, %v2436
    %v2438 = vsel %vm1868, %v2437, %v2433
    %v2439 = vlaneseq
    %v2440 = vshrl.u32 %v2439, 7
    %v2441 = vsub.s32 %v1870, %v2440
    %v2442 = vrot.slane %v1423, %v2441
    %v2443 = vsel %vm1875, %v2442, %v2438
    %v2444 = vlaneseq
    %v2445 = vshrl.u32 %v2444, 7
    %v2446 = vsub.s32 %v1877, %v2445
    %v2447 = vrot.slane %v1424, %v2446
    %v2448 = vsel %vm1882, %v2447, %v2443
    %v2449 = vlaneseq
    %v2450 = vshrl.u32 %v2449, 7
    %v2451 = vsub.s32 %v1884, %v2450
    %v2452 = vrot.slane %v1425, %v2451
    %v2453 = vsel %vm1889, %v2452, %v2448
    %v2454 = vlaneseq
    %v2455 = vshrl.u32 %v2454, 7
    %v2456 = vsub.s32 %v1891, %v2455
    %v2457 = vrot.slane %v1426, %v2456
    %v2458 = vsel %vm1896, %v2457, %v2453
    %v2459 = vlaneseq
    %v2460 = vshrl.u32 %v2459, 7
    %v2461 = vsub.s32 %v1898, %v2460
    %v2462 = vrot.slane %v1427, %v2461
    %v2463 = vsel %vm1903, %v2462, %v2458
    %v2464 = vlaneseq
    %v2465 = vshrl.u32 %v2464, 7
    %v2466 = vsub.s32 %v1905, %v2465
    %v2467 = vrot.slane %v1428, %v2466
    %v2468 = vsel %vm1910, %v2467, %v2463
    %v2469 = vlaneseq
    %v2470 = vshrl.u32 %v2469, 7
    %v2471 = vsub.s32 %v1912, %v2470
    %v2472 = vrot.slane %v1429, %v2471
    %v2473 = vsel %vm1917, %v2472, %v2468
    %v2474 = vlaneseq
    %v2475 = vshrl.u32 %v2474, 7
    %v2476 = vsub.s32 %v1919, %v2475
    %v2477 = vrot.slane %v1430, %v2476
    %v2478 = vsel %vm1924, %v2477, %v2473
    %v2479 = vlaneseq
    %v2480 = vshrl.u32 %v2479, 7
    %v2481 = vsub.s32 %v1816, %v2480
    %v2482 = vrot.slane %v1431, %v2481
    %v2483 = vlaneseq
    %v2484 = vshrl.u32 %v2483, 7
    %v2485 = vsub.s32 %v1821, %v2484
    %v2486 = vrot.slane %v1432, %v2485
    %v2487 = vsel %vm1826, %v2486, %v2482
    %v2488 = vlaneseq
    %v2489 = vshrl.u32 %v2488, 7
    %v2490 = vsub.s32 %v1828, %v2489
    %v2491 = vrot.slane %v1433, %v2490
    %v2492 = vsel %vm1833, %v2491, %v2487
    %v2493 = vlaneseq
    %v2494 = vshrl.u32 %v2493, 7
    %v2495 = vsub.s32 %v1835, %v2494
    %v2496 = vrot.slane %v1434, %v2495
    %v2497 = vsel %vm1840, %v2496, %v2492
    %v2498 = vlaneseq
    %v2499 = vshrl.u32 %v2498, 7
    %v2500 = vsub.s32 %v1842, %v2499
    %v2501 = vrot.slane %v1435, %v2500
    %v2502 = vsel %vm1847, %v2501, %v2497
    %v2503 = vlaneseq
    %v2504 = vshrl.u32 %v2503, 7
    %v2505 = vsub.s32 %v1849, %v2504
    %v2506 = vrot.slane %v1436, %v2505
    %v2507 = vsel %vm1854, %v2506, %v2502
    %v2508 = vlaneseq
    %v2509 = vshrl.u32 %v2508, 7
    %v2510 = vsub.s32 %v1856, %v2509
    %v2511 = vrot.slane %v1437, %v2510
    %v2512 = vsel %vm1861, %v2511, %v2507
    %v2513 = vlaneseq
    %v2514 = vshrl.u32 %v2513, 7
    %v2515 = vsub.s32 %v1863, %v2514
    %v2516 = vrot.slane %v1438, %v2515
    %v2517 = vsel %vm1868, %v2516, %v2512
    %v2518 = vlaneseq
    %v2519 = vshrl.u32 %v2518, 7
    %v2520 = vsub.s32 %v1870, %v2519
    %v2521 = vrot.slane %v1439, %v2520
    %v2522 = vsel %vm1875, %v2521, %v2517
    %v2523 = vlaneseq
    %v2524 = vshrl.u32 %v2523, 7
    %v2525 = vsub.s32 %v1877, %v2524
    %v2526 = vrot.slane %v1440, %v2525
    %v2527 = vsel %vm1882, %v2526, %v2522
    %v2528 = vlaneseq
    %v2529 = vshrl.u32 %v2528, 7
    %v2530 = vsub.s32 %v1884, %v2529
    %v2531 = vrot.slane %v1441, %v2530
    %v2532 = vsel %vm1889, %v2531, %v2527
    %v2533 = vlaneseq
    %v2534 = vshrl.u32 %v2533, 7
    %v2535 = vsub.s32 %v1891, %v2534
    %v2536 = vrot.slane %v1442, %v2535
    %v2537 = vsel %vm1896, %v2536, %v2532
    %v2538 = vlaneseq
    %v2539 = vshrl.u32 %v2538, 7
    %v2540 = vsub.s32 %v1898, %v2539
    %v2541 = vrot.slane %v1443, %v2540
    %v2542 = vsel %vm1903, %v2541, %v2537
    %v2543 = vlaneseq
    %v2544 = vshrl.u32 %v2543, 7
    %v2545 = vsub.s32 %v1905, %v2544
    %v2546 = vrot.slane %v1444, %v2545
    %v2547 = vsel %vm1910, %v2546, %v2542
    %v2548 = vlaneseq
    %v2549 = vshrl.u32 %v2548, 7
    %v2550 = vsub.s32 %v1912, %v2549
    %v2551 = vrot.slane %v1445, %v2550
    %v2552 = vsel %vm1917, %v2551, %v2547
    %v2553 = vlaneseq
    %v2554 = vshrl.u32 %v2553, 7
    %v2555 = vsub.s32 %v1919, %v2554
    %v2556 = vrot.slane %v1446, %v2555
    %v2557 = vsel %vm1924, %v2556, %v2552
    %v2558 = vlaneseq
    %v2559 = vshrl.u32 %v2558, 7
    %v2560 = vsub.s32 %v1816, %v2559
    %v2561 = vrot.slane %v1447, %v2560
    %v2562 = vlaneseq
    %v2563 = vshrl.u32 %v2562, 7
    %v2564 = vsub.s32 %v1821, %v2563
    %v2565 = vrot.slane %v1448, %v2564
    %v2566 = vsel %vm1826, %v2565, %v2561
    %v2567 = vlaneseq
    %v2568 = vshrl.u32 %v2567, 7
    %v2569 = vsub.s32 %v1828, %v2568
    %v2570 = vrot.slane %v1449, %v2569
    %v2571 = vsel %vm1833, %v2570, %v2566
    %v2572 = vlaneseq
    %v2573 = vshrl.u32 %v2572, 7
    %v2574 = vsub.s32 %v1835, %v2573
    %v2575 = vrot.slane %v1450, %v2574
    %v2576 = vsel %vm1840, %v2575, %v2571
    %v2577 = vlaneseq
    %v2578 = vshrl.u32 %v2577, 7
    %v2579 = vsub.s32 %v1842, %v2578
    %v2580 = vrot.slane %v1451, %v2579
    %v2581 = vsel %vm1847, %v2580, %v2576
    %v2582 = vlaneseq
    %v2583 = vshrl.u32 %v2582, 7
    %v2584 = vsub.s32 %v1849, %v2583
    %v2585 = vrot.slane %v1452, %v2584
    %v2586 = vsel %vm1854, %v2585, %v2581
    %v2587 = vlaneseq
    %v2588 = vshrl.u32 %v2587, 7
    %v2589 = vsub.s32 %v1856, %v2588
    %v2590 = vrot.slane %v1453, %v2589
    %v2591 = vsel %vm1861, %v2590, %v2586
    %v2592 = vlaneseq
    %v2593 = vshrl.u32 %v2592, 7
    %v2594 = vsub.s32 %v1863, %v2593
    %v2595 = vrot.slane %v1454, %v2594
    %v2596 = vsel %vm1868, %v2595, %v2591
    %v2597 = vlaneseq
    %v2598 = vshrl.u32 %v2597, 7
    %v2599 = vsub.s32 %v1870, %v2598
    %v2600 = vrot.slane %v1455, %v2599
    %v2601 = vsel %vm1875, %v2600, %v2596
    %v2602 = vlaneseq
    %v2603 = vshrl.u32 %v2602, 7
    %v2604 = vsub.s32 %v1877, %v2603
    %v2605 = vrot.slane %v1456, %v2604
    %v2606 = vsel %vm1882, %v2605, %v2601
    %v2607 = vlaneseq
    %v2608 = vshrl.u32 %v2607, 7
    %v2609 = vsub.s32 %v1884, %v2608
    %v2610 = vrot.slane %v1457, %v2609
    %v2611 = vsel %vm1889, %v2610, %v2606
    %v2612 = vlaneseq
    %v2613 = vshrl.u32 %v2612, 7
    %v2614 = vsub.s32 %v1891, %v2613
    %v2615 = vrot.slane %v1458, %v2614
    %v2616 = vsel %vm1896, %v2615, %v2611
    %v2617 = vlaneseq
    %v2618 = vshrl.u32 %v2617, 7
    %v2619 = vsub.s32 %v1898, %v2618
    %v2620 = vrot.slane %v1459, %v2619
    %v2621 = vsel %vm1903, %v2620, %v2616
    %v2622 = vlaneseq
    %v2623 = vshrl.u32 %v2622, 7
    %v2624 = vsub.s32 %v1905, %v2623
    %v2625 = vrot.slane %v1460, %v2624
    %v2626 = vsel %vm1910, %v2625, %v2621
    %v2627 = vlaneseq
    %v2628 = vshrl.u32 %v2627, 7
    %v2629 = vsub.s32 %v1912, %v2628
    %v2630 = vrot.slane %v1461, %v2629
    %v2631 = vsel %vm1917, %v2630, %v2626
    %v2632 = vlaneseq
    %v2633 = vshrl.u32 %v2632, 7
    %v2634 = vsub.s32 %v1919, %v2633
    %v2635 = vrot.slane %v1462, %v2634
    %v2636 = vsel %vm1924, %v2635, %v2631
    %v2637 = vlaneseq
    %v2638 = vshrl.u32 %v2637, 7
    %v2639 = vsub.s32 %v1816, %v2638
    %v2640 = vrot.slane %v1463, %v2639
    %v2641 = vlaneseq
    %v2642 = vshrl.u32 %v2641, 7
    %v2643 = vsub.s32 %v1821, %v2642
    %v2644 = vrot.slane %v1464, %v2643
    %v2645 = vsel %vm1826, %v2644, %v2640
    %v2646 = vlaneseq
    %v2647 = vshrl.u32 %v2646, 7
    %v2648 = vsub.s32 %v1828, %v2647
    %v2649 = vrot.slane %v1465, %v2648
    %v2650 = vsel %vm1833, %v2649, %v2645
    %v2651 = vlaneseq
    %v2652 = vshrl.u32 %v2651, 7
    %v2653 = vsub.s32 %v1835, %v2652
    %v2654 = vrot.slane %v1466, %v2653
    %v2655 = vsel %vm1840, %v2654, %v2650
    %v2656 = vlaneseq
    %v2657 = vshrl.u32 %v2656, 7
    %v2658 = vsub.s32 %v1842, %v2657
    %v2659 = vrot.slane %v1467, %v2658
    %v2660 = vsel %vm1847, %v2659, %v2655
    %v2661 = vlaneseq
    %v2662 = vshrl.u32 %v2661, 7
    %v2663 = vsub.s32 %v1849, %v2662
    %v2664 = vrot.slane %v1468, %v2663
    %v2665 = vsel %vm1854, %v2664, %v2660
    %v2666 = vlaneseq
    %v2667 = vshrl.u32 %v2666, 7
    %v2668 = vsub.s32 %v1856, %v2667
    %v2669 = vrot.slane %v1469, %v2668
    %v2670 = vsel %vm1861, %v2669, %v2665
    %v2671 = vlaneseq
    %v2672 = vshrl.u32 %v2671, 7
    %v2673 = vsub.s32 %v1863, %v2672
    %v2674 = vrot.slane %v1470, %v2673
    %v2675 = vsel %vm1868, %v2674, %v2670
    %v2676 = vlaneseq
    %v2677 = vshrl.u32 %v2676, 7
    %v2678 = vsub.s32 %v1870, %v2677
    %v2679 = vrot.slane %v1471, %v2678
    %v2680 = vsel %vm1875, %v2679, %v2675
    %v2681 = vlaneseq
    %v2682 = vshrl.u32 %v2681, 7
    %v2683 = vsub.s32 %v1877, %v2682
    %v2684 = vrot.slane %v1472, %v2683
    %v2685 = vsel %vm1882, %v2684, %v2680
    %v2686 = vlaneseq
    %v2687 = vshrl.u32 %v2686, 7
    %v2688 = vsub.s32 %v1884, %v2687
    %v2689 = vrot.slane %v1473, %v2688
    %v2690 = vsel %vm1889, %v2689, %v2685
    %v2691 = vlaneseq
    %v2692 = vshrl.u32 %v2691, 7
    %v2693 = vsub.s32 %v1891, %v2692
    %v2694 = vrot.slane %v1474, %v2693
    %v2695 = vsel %vm1896, %v2694, %v2690
    %v2696 = vlaneseq
    %v2697 = vshrl.u32 %v2696, 7
    %v2698 = vsub.s32 %v1898, %v2697
    %v2699 = vrot.slane %v1475, %v2698
    %v2700 = vsel %vm1903, %v2699, %v2695
    %v2701 = vlaneseq
    %v2702 = vshrl.u32 %v2701, 7
    %v2703 = vsub.s32 %v1905, %v2702
    %v2704 = vrot.slane %v1476, %v2703
    %v2705 = vsel %vm1910, %v2704, %v2700
    %v2706 = vlaneseq
    %v2707 = vshrl.u32 %v2706, 7
    %v2708 = vsub.s32 %v1912, %v2707
    %v2709 = vrot.slane %v1477, %v2708
    %v2710 = vsel %vm1917, %v2709, %v2705
    %v2711 = vlaneseq
    %v2712 = vshrl.u32 %v2711, 7
    %v2713 = vsub.s32 %v1919, %v2712
    %v2714 = vrot.slane %v1478, %v2713
    %v2715 = vsel %vm1924, %v2714, %v2710
    %v2716 = vlaneseq
    %v2717 = vshrl.u32 %v2716, 7
    %v2718 = vsub.s32 %v1816, %v2717
    %v2719 = vrot.slane %v1479, %v2718
    %v2720 = vlaneseq
    %v2721 = vshrl.u32 %v2720, 7
    %v2722 = vsub.s32 %v1821, %v2721
    %v2723 = vrot.slane %v1480, %v2722
    %v2724 = vsel %vm1826, %v2723, %v2719
    %v2725 = vlaneseq
    %v2726 = vshrl.u32 %v2725, 7
    %v2727 = vsub.s32 %v1828, %v2726
    %v2728 = vrot.slane %v1481, %v2727
    %v2729 = vsel %vm1833, %v2728, %v2724
    %v2730 = vlaneseq
    %v2731 = vshrl.u32 %v2730, 7
    %v2732 = vsub.s32 %v1835, %v2731
    %v2733 = vrot.slane %v1482, %v2732
    %v2734 = vsel %vm1840, %v2733, %v2729
    %v2735 = vlaneseq
    %v2736 = vshrl.u32 %v2735, 7
    %v2737 = vsub.s32 %v1842, %v2736
    %v2738 = vrot.slane %v1483, %v2737
    %v2739 = vsel %vm1847, %v2738, %v2734
    %v2740 = vlaneseq
    %v2741 = vshrl.u32 %v2740, 7
    %v2742 = vsub.s32 %v1849, %v2741
    %v2743 = vrot.slane %v1484, %v2742
    %v2744 = vsel %vm1854, %v2743, %v2739
    %v2745 = vlaneseq
    %v2746 = vshrl.u32 %v2745, 7
    %v2747 = vsub.s32 %v1856, %v2746
    %v2748 = vrot.slane %v1485, %v2747
    %v2749 = vsel %vm1861, %v2748, %v2744
    %v2750 = vlaneseq
    %v2751 = vshrl.u32 %v2750, 7
    %v2752 = vsub.s32 %v1863, %v2751
    %v2753 = vrot.slane %v1486, %v2752
    %v2754 = vsel %vm1868, %v2753, %v2749
    %v2755 = vlaneseq
    %v2756 = vshrl.u32 %v2755, 7
    %v2757 = vsub.s32 %v1870, %v2756
    %v2758 = vrot.slane %v1487, %v2757
    %v2759 = vsel %vm1875, %v2758, %v2754
    %v2760 = vlaneseq
    %v2761 = vshrl.u32 %v2760, 7
    %v2762 = vsub.s32 %v1877, %v2761
    %v2763 = vrot.slane %v1488, %v2762
    %v2764 = vsel %vm1882, %v2763, %v2759
    %v2765 = vlaneseq
    %v2766 = vshrl.u32 %v2765, 7
    %v2767 = vsub.s32 %v1884, %v2766
    %v2768 = vrot.slane %v1489, %v2767
    %v2769 = vsel %vm1889, %v2768, %v2764
    %v2770 = vlaneseq
    %v2771 = vshrl.u32 %v2770, 7
    %v2772 = vsub.s32 %v1891, %v2771
    %v2773 = vrot.slane %v1490, %v2772
    %v2774 = vsel %vm1896, %v2773, %v2769
    %v2775 = vlaneseq
    %v2776 = vshrl.u32 %v2775, 7
    %v2777 = vsub.s32 %v1898, %v2776
    %v2778 = vrot.slane %v1491, %v2777
    %v2779 = vsel %vm1903, %v2778, %v2774
    %v2780 = vlaneseq
    %v2781 = vshrl.u32 %v2780, 7
    %v2782 = vsub.s32 %v1905, %v2781
    %v2783 = vrot.slane %v1492, %v2782
    %v2784 = vsel %vm1910, %v2783, %v2779
    %v2785 = vlaneseq
    %v2786 = vshrl.u32 %v2785, 7
    %v2787 = vsub.s32 %v1912, %v2786
    %v2788 = vrot.slane %v1493, %v2787
    %v2789 = vsel %vm1917, %v2788, %v2784
    %v2790 = vlaneseq
    %v2791 = vshrl.u32 %v2790, 7
    %v2792 = vsub.s32 %v1919, %v2791
    %v2793 = vrot.slane %v1494, %v2792
    %v2794 = vsel %vm1924, %v2793, %v2789
    %v2795 = vlaneseq
    %v2796 = vshrl.u32 %v2795, 7
    %v2797 = vsub.s32 %v1816, %v2796
    %v2798 = vrot.slane %v1495, %v2797
    %v2799 = vlaneseq
    %v2800 = vshrl.u32 %v2799, 7
    %v2801 = vsub.s32 %v1821, %v2800
    %v2802 = vrot.slane %v1496, %v2801
    %v2803 = vsel %vm1826, %v2802, %v2798
    %v2804 = vlaneseq
    %v2805 = vshrl.u32 %v2804, 7
    %v2806 = vsub.s32 %v1828, %v2805
    %v2807 = vrot.slane %v1497, %v2806
    %v2808 = vsel %vm1833, %v2807, %v2803
    %v2809 = vlaneseq
    %v2810 = vshrl.u32 %v2809, 7
    %v2811 = vsub.s32 %v1835, %v2810
    %v2812 = vrot.slane %v1498, %v2811
    %v2813 = vsel %vm1840, %v2812, %v2808
    %v2814 = vlaneseq
    %v2815 = vshrl.u32 %v2814, 7
    %v2816 = vsub.s32 %v1842, %v2815
    %v2817 = vrot.slane %v1499, %v2816
    %v2818 = vsel %vm1847, %v2817, %v2813
    %v2819 = vlaneseq
    %v2820 = vshrl.u32 %v2819, 7
    %v2821 = vsub.s32 %v1849, %v2820
    %v2822 = vrot.slane %v1500, %v2821
    %v2823 = vsel %vm1854, %v2822, %v2818
    %v2824 = vlaneseq
    %v2825 = vshrl.u32 %v2824, 7
    %v2826 = vsub.s32 %v1856, %v2825
    %v2827 = vrot.slane %v1501, %v2826
    %v2828 = vsel %vm1861, %v2827, %v2823
    %v2829 = vlaneseq
    %v2830 = vshrl.u32 %v2829, 7
    %v2831 = vsub.s32 %v1863, %v2830
    %v2832 = vrot.slane %v1502, %v2831
    %v2833 = vsel %vm1868, %v2832, %v2828
    %v2834 = vlaneseq
    %v2835 = vshrl.u32 %v2834, 7
    %v2836 = vsub.s32 %v1870, %v2835
    %v2837 = vrot.slane %v1503, %v2836
    %v2838 = vsel %vm1875, %v2837, %v2833
    %v2839 = vlaneseq
    %v2840 = vshrl.u32 %v2839, 7
    %v2841 = vsub.s32 %v1877, %v2840
    %v2842 = vrot.slane %v1504, %v2841
    %v2843 = vsel %vm1882, %v2842, %v2838
    %v2844 = vlaneseq
    %v2845 = vshrl.u32 %v2844, 7
    %v2846 = vsub.s32 %v1884, %v2845
    %v2847 = vrot.slane %v1505, %v2846
    %v2848 = vsel %vm1889, %v2847, %v2843
    %v2849 = vlaneseq
    %v2850 = vshrl.u32 %v2849, 7
    %v2851 = vsub.s32 %v1891, %v2850
    %v2852 = vrot.slane %v1506, %v2851
    %v2853 = vsel %vm1896, %v2852, %v2848
    %v2854 = vlaneseq
    %v2855 = vshrl.u32 %v2854, 7
    %v2856 = vsub.s32 %v1898, %v2855
    %v2857 = vrot.slane %v1507, %v2856
    %v2858 = vsel %vm1903, %v2857, %v2853
    %v2859 = vlaneseq
    %v2860 = vshrl.u32 %v2859, 7
    %v2861 = vsub.s32 %v1905, %v2860
    %v2862 = vrot.slane %v1508, %v2861
    %v2863 = vsel %vm1910, %v2862, %v2858
    %v2864 = vlaneseq
    %v2865 = vshrl.u32 %v2864, 7
    %v2866 = vsub.s32 %v1912, %v2865
    %v2867 = vrot.slane %v1509, %v2866
    %v2868 = vsel %vm1917, %v2867, %v2863
    %v2869 = vlaneseq
    %v2870 = vshrl.u32 %v2869, 7
    %v2871 = vsub.s32 %v1919, %v2870
    %v2872 = vrot.slane %v1510, %v2871
    %v2873 = vsel %vm1924, %v2872, %v2868
    %v2874 = vlaneseq
    %v2875 = vshrl.u32 %v2874, 7
    %v2876 = vsub.s32 %v1816, %v2875
    %v2877 = vrot.slane %v1511, %v2876
    %v2878 = vlaneseq
    %v2879 = vshrl.u32 %v2878, 7
    %v2880 = vsub.s32 %v1821, %v2879
    %v2881 = vrot.slane %v1512, %v2880
    %v2882 = vsel %vm1826, %v2881, %v2877
    %v2883 = vlaneseq
    %v2884 = vshrl.u32 %v2883, 7
    %v2885 = vsub.s32 %v1828, %v2884
    %v2886 = vrot.slane %v1513, %v2885
    %v2887 = vsel %vm1833, %v2886, %v2882
    %v2888 = vlaneseq
    %v2889 = vshrl.u32 %v2888, 7
    %v2890 = vsub.s32 %v1835, %v2889
    %v2891 = vrot.slane %v1514, %v2890
    %v2892 = vsel %vm1840, %v2891, %v2887
    %v2893 = vlaneseq
    %v2894 = vshrl.u32 %v2893, 7
    %v2895 = vsub.s32 %v1842, %v2894
    %v2896 = vrot.slane %v1515, %v2895
    %v2897 = vsel %vm1847, %v2896, %v2892
    %v2898 = vlaneseq
    %v2899 = vshrl.u32 %v2898, 7
    %v2900 = vsub.s32 %v1849, %v2899
    %v2901 = vrot.slane %v1516, %v2900
    %v2902 = vsel %vm1854, %v2901, %v2897
    %v2903 = vlaneseq
    %v2904 = vshrl.u32 %v2903, 7
    %v2905 = vsub.s32 %v1856, %v2904
    %v2906 = vrot.slane %v1517, %v2905
    %v2907 = vsel %vm1861, %v2906, %v2902
    %v2908 = vlaneseq
    %v2909 = vshrl.u32 %v2908, 7
    %v2910 = vsub.s32 %v1863, %v2909
    %v2911 = vrot.slane %v1518, %v2910
    %v2912 = vsel %vm1868, %v2911, %v2907
    %v2913 = vlaneseq
    %v2914 = vshrl.u32 %v2913, 7
    %v2915 = vsub.s32 %v1870, %v2914
    %v2916 = vrot.slane %v1519, %v2915
    %v2917 = vsel %vm1875, %v2916, %v2912
    %v2918 = vlaneseq
    %v2919 = vshrl.u32 %v2918, 7
    %v2920 = vsub.s32 %v1877, %v2919
    %v2921 = vrot.slane %v1520, %v2920
    %v2922 = vsel %vm1882, %v2921, %v2917
    %v2923 = vlaneseq
    %v2924 = vshrl.u32 %v2923, 7
    %v2925 = vsub.s32 %v1884, %v2924
    %v2926 = vrot.slane %v1521, %v2925
    %v2927 = vsel %vm1889, %v2926, %v2922
    %v2928 = vlaneseq
    %v2929 = vshrl.u32 %v2928, 7
    %v2930 = vsub.s32 %v1891, %v2929
    %v2931 = vrot.slane %v1522, %v2930
    %v2932 = vsel %vm1896, %v2931, %v2927
    %v2933 = vlaneseq
    %v2934 = vshrl.u32 %v2933, 7
    %v2935 = vsub.s32 %v1898, %v2934
    %v2936 = vrot.slane %v1523, %v2935
    %v2937 = vsel %vm1903, %v2936, %v2932
    %v2938 = vlaneseq
    %v2939 = vshrl.u32 %v2938, 7
    %v2940 = vsub.s32 %v1905, %v2939
    %v2941 = vrot.slane %v1524, %v2940
    %v2942 = vsel %vm1910, %v2941, %v2937
    %v2943 = vlaneseq
    %v2944 = vshrl.u32 %v2943, 7
    %v2945 = vsub.s32 %v1912, %v2944
    %v2946 = vrot.slane %v1525, %v2945
    %v2947 = vsel %vm1917, %v2946, %v2942
    %v2948 = vlaneseq
    %v2949 = vshrl.u32 %v2948, 7
    %v2950 = vsub.s32 %v1919, %v2949
    %v2951 = vrot.slane %v1526, %v2950
    %v2952 = vsel %vm1924, %v2951, %v2947
    %v2953 = vlaneseq
    %v2954 = vshrl.u32 %v2953, 7
    %v2955 = vsub.s32 %v1816, %v2954
    %v2956 = vrot.slane %v1527, %v2955
    %v2957 = vlaneseq
    %v2958 = vshrl.u32 %v2957, 7
    %v2959 = vsub.s32 %v1821, %v2958
    %v2960 = vrot.slane %v1528, %v2959
    %v2961 = vsel %vm1826, %v2960, %v2956
    %v2962 = vlaneseq
    %v2963 = vshrl.u32 %v2962, 7
    %v2964 = vsub.s32 %v1828, %v2963
    %v2965 = vrot.slane %v1529, %v2964
    %v2966 = vsel %vm1833, %v2965, %v2961
    %v2967 = vlaneseq
    %v2968 = vshrl.u32 %v2967, 7
    %v2969 = vsub.s32 %v1835, %v2968
    %v2970 = vrot.slane %v1530, %v2969
    %v2971 = vsel %vm1840, %v2970, %v2966
    %v2972 = vlaneseq
    %v2973 = vshrl.u32 %v2972, 7
    %v2974 = vsub.s32 %v1842, %v2973
    %v2975 = vrot.slane %v1531, %v2974
    %v2976 = vsel %vm1847, %v2975, %v2971
    %v2977 = vlaneseq
    %v2978 = vshrl.u32 %v2977, 7
    %v2979 = vsub.s32 %v1849, %v2978
    %v2980 = vrot.slane %v1532, %v2979
    %v2981 = vsel %vm1854, %v2980, %v2976
    %v2982 = vlaneseq
    %v2983 = vshrl.u32 %v2982, 7
    %v2984 = vsub.s32 %v1856, %v2983
    %v2985 = vrot.slane %v1533, %v2984
    %v2986 = vsel %vm1861, %v2985, %v2981
    %v2987 = vlaneseq
    %v2988 = vshrl.u32 %v2987, 7
    %v2989 = vsub.s32 %v1863, %v2988
    %v2990 = vrot.slane %v1534, %v2989
    %v2991 = vsel %vm1868, %v2990, %v2986
    %v2992 = vlaneseq
    %v2993 = vshrl.u32 %v2992, 7
    %v2994 = vsub.s32 %v1870, %v2993
    %v2995 = vrot.slane %v1535, %v2994
    %v2996 = vsel %vm1875, %v2995, %v2991
    %v2997 = vlaneseq
    %v2998 = vshrl.u32 %v2997, 7
    %v2999 = vsub.s32 %v1877, %v2998
    %v3000 = vrot.slane %v1536, %v2999
    %v3001 = vsel %vm1882, %v3000, %v2996
    %v3002 = vlaneseq
    %v3003 = vshrl.u32 %v3002, 7
    %v3004 = vsub.s32 %v1884, %v3003
    %v3005 = vrot.slane %v1537, %v3004
    %v3006 = vsel %vm1889, %v3005, %v3001
    %v3007 = vlaneseq
    %v3008 = vshrl.u32 %v3007, 7
    %v3009 = vsub.s32 %v1891, %v3008
    %v3010 = vrot.slane %v1538, %v3009
    %v3011 = vsel %vm1896, %v3010, %v3006
    %v3012 = vlaneseq
    %v3013 = vshrl.u32 %v3012, 7
    %v3014 = vsub.s32 %v1898, %v3013
    %v3015 = vrot.slane %v1539, %v3014
    %v3016 = vsel %vm1903, %v3015, %v3011
    %v3017 = vlaneseq
    %v3018 = vshrl.u32 %v3017, 7
    %v3019 = vsub.s32 %v1905, %v3018
    %v3020 = vrot.slane %v1540, %v3019
    %v3021 = vsel %vm1910, %v3020, %v3016
    %v3022 = vlaneseq
    %v3023 = vshrl.u32 %v3022, 7
    %v3024 = vsub.s32 %v1912, %v3023
    %v3025 = vrot.slane %v1541, %v3024
    %v3026 = vsel %vm1917, %v3025, %v3021
    %v3027 = vlaneseq
    %v3028 = vshrl.u32 %v3027, 7
    %v3029 = vsub.s32 %v1919, %v3028
    %v3030 = vrot.slane %v1542, %v3029
    %v3031 = vsel %vm1924, %v3030, %v3026
    %v3032 = vlaneseq
    %v3033 = vshrl.u32 %v3032, 7
    %v3034 = vsub.s32 %v1816, %v3033
    %v3035 = vrot.slane %v1543, %v3034
    %v3036 = vlaneseq
    %v3037 = vshrl.u32 %v3036, 7
    %v3038 = vsub.s32 %v1821, %v3037
    %v3039 = vrot.slane %v1544, %v3038
    %v3040 = vsel %vm1826, %v3039, %v3035
    %v3041 = vlaneseq
    %v3042 = vshrl.u32 %v3041, 7
    %v3043 = vsub.s32 %v1828, %v3042
    %v3044 = vrot.slane %v1545, %v3043
    %v3045 = vsel %vm1833, %v3044, %v3040
    %v3046 = vlaneseq
    %v3047 = vshrl.u32 %v3046, 7
    %v3048 = vsub.s32 %v1835, %v3047
    %v3049 = vrot.slane %v1546, %v3048
    %v3050 = vsel %vm1840, %v3049, %v3045
    %v3051 = vlaneseq
    %v3052 = vshrl.u32 %v3051, 7
    %v3053 = vsub.s32 %v1842, %v3052
    %v3054 = vrot.slane %v1547, %v3053
    %v3055 = vsel %vm1847, %v3054, %v3050
    %v3056 = vlaneseq
    %v3057 = vshrl.u32 %v3056, 7
    %v3058 = vsub.s32 %v1849, %v3057
    %v3059 = vrot.slane %v1548, %v3058
    %v3060 = vsel %vm1854, %v3059, %v3055
    %v3061 = vlaneseq
    %v3062 = vshrl.u32 %v3061, 7
    %v3063 = vsub.s32 %v1856, %v3062
    %v3064 = vrot.slane %v1549, %v3063
    %v3065 = vsel %vm1861, %v3064, %v3060
    %v3066 = vlaneseq
    %v3067 = vshrl.u32 %v3066, 7
    %v3068 = vsub.s32 %v1863, %v3067
    %v3069 = vrot.slane %v1550, %v3068
    %v3070 = vsel %vm1868, %v3069, %v3065
    %v3071 = vlaneseq
    %v3072 = vshrl.u32 %v3071, 7
    %v3073 = vsub.s32 %v1870, %v3072
    %v3074 = vrot.slane %v1551, %v3073
    %v3075 = vsel %vm1875, %v3074, %v3070
    %v3076 = vlaneseq
    %v3077 = vshrl.u32 %v3076, 7
    %v3078 = vsub.s32 %v1877, %v3077
    %v3079 = vrot.slane %v1552, %v3078
    %v3080 = vsel %vm1882, %v3079, %v3075
    %v3081 = vlaneseq
    %v3082 = vshrl.u32 %v3081, 7
    %v3083 = vsub.s32 %v1884, %v3082
    %v3084 = vrot.slane %v1553, %v3083
    %v3085 = vsel %vm1889, %v3084, %v3080
    %v3086 = vlaneseq
    %v3087 = vshrl.u32 %v3086, 7
    %v3088 = vsub.s32 %v1891, %v3087
    %v3089 = vrot.slane %v1554, %v3088
    %v3090 = vsel %vm1896, %v3089, %v3085
    %v3091 = vlaneseq
    %v3092 = vshrl.u32 %v3091, 7
    %v3093 = vsub.s32 %v1898, %v3092
    %v3094 = vrot.slane %v1555, %v3093
    %v3095 = vsel %vm1903, %v3094, %v3090
    %v3096 = vlaneseq
    %v3097 = vshrl.u32 %v3096, 7
    %v3098 = vsub.s32 %v1905, %v3097
    %v3099 = vrot.slane %v1556, %v3098
    %v3100 = vsel %vm1910, %v3099, %v3095
    %v3101 = vlaneseq
    %v3102 = vshrl.u32 %v3101, 7
    %v3103 = vsub.s32 %v1912, %v3102
    %v3104 = vrot.slane %v1557, %v3103
    %v3105 = vsel %vm1917, %v3104, %v3100
    %v3106 = vlaneseq
    %v3107 = vshrl.u32 %v3106, 7
    %v3108 = vsub.s32 %v1919, %v3107
    %v3109 = vrot.slane %v1558, %v3108
    %v3110 = vsel %vm1924, %v3109, %v3105
    %vm3111 = vcmask 1041409
    %v3112 = vsel %vm3111, %v2083, %v1925
    %vm3113 = vcmask 1042434
    %v3114 = vsel %vm3113, %v2241, %v3112
    %vm3115 = vcmask 1043459
    %v3116 = vsel %vm3115, %v2399, %v3114
    %vm3117 = vcmask 1044484
    %v3118 = vsel %vm3117, %v2557, %v3116
    %vm3119 = vcmask 1045509
    %v3120 = vsel %vm3119, %v2715, %v3118
    %vm3121 = vcmask 1046534
    %v3122 = vsel %vm3121, %v2873, %v3120
    %vm3123 = vcmask 1047559
    %v3124 = vsel %vm3123, %v3031, %v3122
    %v3125 = vsel %vm3111, %v2162, %v2004
    %v3126 = vsel %vm3113, %v2320, %v3125
    %v3127 = vsel %vm3115, %v2478, %v3126
    %v3128 = vsel %vm3117, %v2636, %v3127
    %v3129 = vsel %vm3119, %v2794, %v3128
    %v3130 = vsel %vm3121, %v2952, %v3129
    %v3131 = vsel %vm3123, %v3110, %v3130
    %3134 = vst [vmem:[#allocation5] sm:$0xff] %v3124
    %3135 = vst [vmem:[#allocation5 + $0x8] sm:$0xff] %v3131
    // Predicated region
    $region10: #{tpu_custom_call.1} parent=1 // pred_check
      _
    $region11: #{tpu_custom_call.1} parent=1 // pred_check_branch
      %3137 = sbr.rel (0) target = $region13
    $region12: #{tpu_custom_call.1} parent=1 // pred_region
      %s3139 = ssub.s32 256, 256
      %3140 = vsyncadd [#allocation4], %s3139
      %s3142 = sshll.u32 [#allocation5], 4
      %s3143 = int_to_ptr.vmem [resolvable:$true] %s3142
      %3145 = dma.vmem_to_hbm [thread:$0]  %s3143, 256, %s1, [#allocation4]
    $region13: #{tpu_custom_call.1} parent=1 // pred_fallthru
      _
    // Predicated region
    $region14: #{tpu_custom_call.1} parent=1 // pred_check
      _
    $region15: #{tpu_custom_call.1} parent=1 // pred_check_branch
      %3147 = sbr.rel (0) target = $region17
    $region16: #{tpu_custom_call.1} parent=1 // pred_region
      %3148 = dma.done [#allocation4], 256
    $region17: #{tpu_custom_call.1} parent=1 // pred_fallthru
      _
    %3149 = vsyncpa [#allocation3], 1
    %3150 = vsyncpa [#allocation4], 1

</llo_original>
